<compile_context>
chip_gen: v7x
topology: tpu7x:2x2x1
jax: 0.10.0
libtpu: 0.0.40
codegen_flags: <defaults>
</compile_context>

<pallas_src>
import functools

import jax
import jax.numpy as jnp
import numpy as np
from jax import lax
from jax.experimental import pallas as pl
from jax.experimental.pallas import tpu as pltpu

EPS = 1e-5
K = 5        # conv1 / conv2 kernel size
PAD = 2      # conv1 / conv2 padding


# ------------------------------ Pallas kernel ------------------------------ #
def _cmul(w, x):
    """(M, C) x (C, N) -> (M, N); broadcast path when the contraction dim is 1."""
    if w.shape[1] == 1:
        return w * x                      # (M,1)*(1,N) -> VPU broadcast, no MXU needed
    return jnp.dot(w, x, preferred_element_type=jnp.float32)


def _residual_kernel(*refs, B, L1, taps, use_1x1conv, eps):
    if use_1x1conv:
        x_ref, w1_ref, w2_ref, bn1_ref, bn2_ref, w3_ref, o_ref, y1p_ref = refs
    else:
        x_ref, w1_ref, w2_ref, bn1_ref, bn2_ref, o_ref, y1p_ref = refs
        w3_ref = None

    # ---- stage 1: conv1 per batch as K shifted-slice products (no im2col) ----
    y1 = []       # (Cmid, L1) f32 per batch, kept resident as values
    sc_in = []    # shortcut input (center tap == x sampled at the conv stride)
    for b in range(B):
        if taps:
            get_tap = lambda j, b=b: x_ref[b * K + j]          # (Cin, L1)
        else:
            xb = x_ref[b]                                      # (Cin, L1 + 2*PAD)
            get_tap = lambda j, xb=xb: xb[:, j:j + L1]         # (Cin, L1)
        acc = _cmul(w1_ref[0], get_tap(0))
        for j in range(1, K):
            acc = acc + _cmul(w1_ref[j], get_tap(j))
        y1.append(acc)
        if use_1x1conv:
            sc_in.append(get_tap(PAD))

    # ---- BN1 (training mode): one-pass stats, folded per-channel scale+shift ----
    # (conv bias is mathematically cancelled by the mean subtraction -> dropped)
    inv_n = 1.0 / float(B * L1)
    s1 = y1[0].sum(axis=1, keepdims=True)
    q1 = (y1[0] * y1[0]).sum(axis=1, keepdims=True)
    for b in range(1, B):
        s1 = s1 + y1[b].sum(axis=1, keepdims=True)
        q1 = q1 + (y1[b] * y1[b]).sum(axis=1, keepdims=True)
    mean1 = s1 * inv_n
    var1 = q1 * inv_n - mean1 * mean1
    scale1 = bn1_ref[:, 0:1] * lax.rsqrt(var1 + eps)           # gamma / sqrt(var+eps)
    shift1 = bn1_ref[:, 1:2] - mean1 * scale1                  # beta - mean*scale

    # ---- stage 2: relu(bn1) -> conv2, via a small zero-padded VMEM scratch ----
    y1p_ref[...] = jnp.zeros_like(y1p_ref)                     # zero the pad columns once
    y2 = []
    for b in range(B):
        y1n = jnp.maximum(y1[b] * scale1 + shift1, 0.0)        # bn1 + relu (one FMA + max)
        y1p_ref[:, PAD:PAD + L1] = y1n
        acc = _cmul(w2_ref[0], y1p_ref[:, 0:L1])
        for j in range(1, K):
            acc = acc + _cmul(w2_ref[j], y1p_ref[:, j:j + L1])
        y2.append(acc)                                         # (Cnum, L1) f32

    # ---- BN2: one-pass stats, folded scale+shift ----
    s2 = y2[0].sum(axis=1, keepdims=True)
    q2 = (y2[0] * y2[0]).sum(axis=1, keepdims=True)
    for b in range(1, B):
        s2 = s2 + y2[b].sum(axis=1, keepdims=True)
        q2 = q2 + (y2[b] * y2[b]).sum(axis=1, keepdims=True)
    mean2 = s2 * inv_n
    var2 = q2 * inv_n - mean2 * mean2
    scale2 = bn2_ref[:, 0:1] * lax.rsqrt(var2 + eps)
    shift2 = bn2_ref[:, 1:2] - mean2 * scale2

    # ---- optional 1x1-conv shortcut (+ its bias) and final ReLU ----
    for b in range(B):
        out = y2[b] * scale2 + shift2
        if use_1x1conv:
            out = out + _cmul(w3_ref[...], sc_in[b]) + bn2_ref[:, 2:3]
        o_ref[b] = jnp.maximum(out, 0.0).astype(o_ref.dtype)


# ------------------------------- JAX wrapper -------------------------------- #
def _full_spec(shape):
    # whole-array block (exempt from the (8,128) tiling rule)
    return pl.BlockSpec(shape, lambda i: (0,) * len(shape))


def residual_forward(params, x, *, use_1x1conv=False, strides=1):
    B, Cin, L = x.shape
    L1 = (L + 2 * PAD - K) // strides + 1
    Cmid = params["w1"].shape[0]
    Cnum = params["w2"].shape[0]

    # tap-major weights so the kernel picks w[j] with a cheap leading index
    w1 = jnp.transpose(params["w1"], (2, 0, 1)).astype(jnp.float32)    # (K, Cmid, Cin)
    w2 = jnp.transpose(params["w2"], (2, 0, 1)).astype(jnp.float32)    # (K, Cnum, Cmid)

    # packed per-channel BN params (conv biases b1/b2 folded away by training-mode BN)
    bn1p = jnp.stack([params["g1"], params["beta1"]], axis=1)          # (Cmid, 2)
    b3 = params["b3"] if use_1x1conv else jnp.zeros((Cnum,), jnp.float32)
    bn2p = jnp.stack([params["g2"], params["beta2"], b3], axis=1)      # (Cnum, 3)

    xp = jnp.pad(x.astype(jnp.float32), ((0, 0), (0, 0), (PAD, PAD)))  # (B, Cin, L+4)
    if strides == 1:
        x_in, taps = xp, False                 # conv taps sliced in-kernel, no duplication
    else:
        # strided conv: pre-gather the K taps (only for the non-default strides>1 path)
        tap_list = [xp[:, :, j:j + strides * (L1 - 1) + 1:strides] for j in range(K)]
        x_in = jnp.stack(tap_list, axis=1).reshape(B * K, Cin, L1)
        taps = True

    inputs = [x_in, w1, w2, bn1p, bn2p]
    in_specs = [_full_spec(a.shape) for a in inputs]
    if use_1x1conv:
        w3 = params["w3"].reshape(Cnum, Cin).astype(jnp.float32)
        inputs.append(w3)
        in_specs.append(_full_spec(w3.shape))

    kernel = functools.partial(
        _residual_kernel, B=B, L1=L1, taps=taps, use_1x1conv=use_1x1conv, eps=EPS)

    return pl.pallas_call(
        kernel,
        out_shape=jax.ShapeDtypeStruct((B, Cnum, L1), jnp.float32),
        grid=(1,),
        in_specs=in_specs,
        out_specs=_full_spec((B, Cnum, L1)),
        scratch_shapes=[pltpu.VMEM((Cmid, L1 + 2 * PAD), jnp.float32)],
        compiler_params=pltpu.CompilerParams(dimension_semantics=("arbitrary",)),
    )(*inputs)


# ------------------------------ parameter init ------------------------------ #
def init_params(key, input_channels=1, mid_channels=32, num_channels=1):
    ks = jax.random.split(key, 10)
    return {
        "w1": 0.2 * jax.random.normal(ks[0], (mid_channels, input_channels, 5), jnp.float32),
        "b1": 0.1 * jax.random.normal(ks[1], (mid_channels,), jnp.float32),
        "w2": 0.2 * jax.random.normal(ks[2], (num_channels, mid_channels, 5), jnp.float32),
        "b2": 0.1 * jax.random.normal(ks[3], (num_channels,), jnp.float32),
        "g1": 1.0 + 0.1 * jax.random.normal(ks[4], (mid_channels,), jnp.float32),
        "beta1": 0.1 * jax.random.normal(ks[5], (mid_channels,), jnp.float32),
        "g2": 1.0 + 0.1 * jax.random.normal(ks[6], (num_channels,), jnp.float32),
        "beta2": 0.1 * jax.random.normal(ks[7], (num_channels,), jnp.float32),
        "w3": 0.2 * jax.random.normal(ks[8], (num_channels, input_channels, 1), jnp.float32),
        "b3": 0.1 * jax.random.normal(ks[9], (num_channels,), jnp.float32),
    }


# ----------------------------- pure-JAX reference --------------------------- #
def _conv1d_ref(x, w, b, stride, pad):
    out = jax.lax.conv_general_dilated(
        x, w, window_strides=(stride,), padding=[(pad, pad)],
        dimension_numbers=("NCH", "OIH", "NCH"))
    return out + b[None, :, None]


def _bn_train_ref(x, g, beta):
    mean = x.mean(axis=(0, 2), keepdims=True)
    var = ((x - mean) ** 2).mean(axis=(0, 2), keepdims=True)
    return g[None, :, None] * (x - mean) / jnp.sqrt(var + EPS) + beta[None, :, None]


def residual_ref(params, x, *, use_1x1conv=False, strides=1):
    # biases b1/b2 ARE applied here (the kernel folds them away exactly)
    y = jax.nn.relu(_bn_train_ref(_conv1d_ref(x, params["w1"], params["b1"], strides, 2),
                                  params["g1"], params["beta1"]))
    y = _bn_train_ref(_conv1d_ref(y, params["w2"], params["b2"], 1, 2),
                      params["g2"], params["beta2"])
    if use_1x1conv:
        y = y + _conv1d_ref(x, params["w3"], params["b3"], strides, 0)
    return jax.nn.relu(y)


if __name__ == "__main__":
    key = jax.random.PRNGKey(0)
    kx, kp = jax.random.split(key)
    B, Cin, L = 2, 1, 64                       # module defaults: input_channels=1
    x = jax.random.normal(kx, (B, Cin, L), jnp.float32)
    params = init_params(kp)

    configs = [dict(use_1x1conv=False, strides=1),   # module default path
               dict(use_1x1conv=True, strides=1),    # shortcut path
               dict(use_1x1conv=True, strides=2)]    # strided (tap-gather) path
    for cfg in configs:
        out = jax.block_until_ready(residual_forward(params, x, **cfg))
        ref = residual_ref(params, x, **cfg)
        np.testing.assert_allclose(np.asarray(out), np.asarray(ref), rtol=1e-2, atol=1e-2)

    print("KERNEL_OK")
</pallas_src>

<mosaic_0001>
module attributes {stable_mosaic.version = 11 : i64} {
  func.func @_residual_kernel(%arg0: i32, %arg1: memref<2x1x68xf32, #tpu.memory_space<vmem>>, %arg2: memref<5x32x1xf32, #tpu.memory_space<vmem>>, %arg3: memref<5x1x32xf32, #tpu.memory_space<vmem>>, %arg4: memref<32x2xf32, #tpu.memory_space<vmem>>, %arg5: memref<1x3xf32, #tpu.memory_space<vmem>>, %arg6: memref<2x1x64xf32, #tpu.memory_space<vmem>>, %arg7: memref<32x68xf32, #tpu.memory_space<vmem>>) attributes {dimension_semantics = [#tpu.dimension_semantics<arbitrary>], iteration_bounds = array<i64: 1>, scalar_prefetch = 0 : i64, scratch_operands = 1 : i64, tpu.core_type = #tpu.core_type<tc>, window_params = [{pipeline_mode = #tpu.pipeline_mode<synchronous>, transform_indices = @transform_0, window_bounds = array<i64: 2, 1, 68>}, {pipeline_mode = #tpu.pipeline_mode<synchronous>, transform_indices = @transform_1, window_bounds = array<i64: 5, 32, 1>}, {pipeline_mode = #tpu.pipeline_mode<synchronous>, transform_indices = @transform_2, window_bounds = array<i64: 5, 1, 32>}, {pipeline_mode = #tpu.pipeline_mode<synchronous>, transform_indices = @transform_3, window_bounds = array<i64: 32, 2>}, {pipeline_mode = #tpu.pipeline_mode<synchronous>, transform_indices = @transform_4, window_bounds = array<i64: 1, 3>}, {pipeline_mode = #tpu.pipeline_mode<synchronous>, transform_indices = @transform_5, window_bounds = array<i64: 2, 1, 64>}]} {
    %c0 = arith.constant 0 : index
    %c0_0 = arith.constant 0 : index
    %c0_1 = arith.constant 0 : index
    %0 = vector.load %arg1[%c0, %c0_0, %c0_1] : memref<2x1x68xf32, #tpu.memory_space<vmem>>, vector<1x1x68xf32>
    %1 = vector.shape_cast %0 : vector<1x1x68xf32> to vector<1x68xf32>
    %c0_2 = arith.constant 0 : index
    %c0_3 = arith.constant 0 : index
    %c0_4 = arith.constant 0 : index
    %2 = vector.load %arg2[%c0_2, %c0_3, %c0_4] : memref<5x32x1xf32, #tpu.memory_space<vmem>>, vector<1x32x1xf32>
    %3 = vector.shape_cast %2 : vector<1x32x1xf32> to vector<32x1xf32>
    %4 = vector.extract_strided_slice %1 {offsets = [0, 0], sizes = [1, 64], strides = [1, 1]} : vector<1x68xf32> to vector<1x64xf32>
    %5 = vector.broadcast %3 : vector<32x1xf32> to vector<32x64xf32>
    %6 = vector.broadcast %4 : vector<1x64xf32> to vector<32x64xf32>
    %7 = arith.mulf %5, %6 : vector<32x64xf32>
    %c1 = arith.constant 1 : index
    %c0_5 = arith.constant 0 : index
    %c0_6 = arith.constant 0 : index
    %8 = vector.load %arg2[%c1, %c0_5, %c0_6] : memref<5x32x1xf32, #tpu.memory_space<vmem>>, vector<1x32x1xf32>
    %9 = vector.shape_cast %8 : vector<1x32x1xf32> to vector<32x1xf32>
    %10 = vector.extract_strided_slice %1 {offsets = [0, 1], sizes = [1, 64], strides = [1, 1]} : vector<1x68xf32> to vector<1x64xf32>
    %11 = vector.broadcast %9 : vector<32x1xf32> to vector<32x64xf32>
    %12 = vector.broadcast %10 : vector<1x64xf32> to vector<32x64xf32>
    %13 = arith.mulf %11, %12 : vector<32x64xf32>
    %14 = arith.addf %7, %13 : vector<32x64xf32>
    %c2 = arith.constant 2 : index
    %c0_7 = arith.constant 0 : index
    %c0_8 = arith.constant 0 : index
    %15 = vector.load %arg2[%c2, %c0_7, %c0_8] : memref<5x32x1xf32, #tpu.memory_space<vmem>>, vector<1x32x1xf32>
    %16 = vector.shape_cast %15 : vector<1x32x1xf32> to vector<32x1xf32>
    %17 = vector.extract_strided_slice %1 {offsets = [0, 2], sizes = [1, 64], strides = [1, 1]} : vector<1x68xf32> to vector<1x64xf32>
    %18 = vector.broadcast %16 : vector<32x1xf32> to vector<32x64xf32>
    %19 = vector.broadcast %17 : vector<1x64xf32> to vector<32x64xf32>
    %20 = arith.mulf %18, %19 : vector<32x64xf32>
    %21 = arith.addf %14, %20 : vector<32x64xf32>
    %c3 = arith.constant 3 : index
    %c0_9 = arith.constant 0 : index
    %c0_10 = arith.constant 0 : index
    %22 = vector.load %arg2[%c3, %c0_9, %c0_10] : memref<5x32x1xf32, #tpu.memory_space<vmem>>, vector<1x32x1xf32>
    %23 = vector.shape_cast %22 : vector<1x32x1xf32> to vector<32x1xf32>
    %24 = vector.extract_strided_slice %1 {offsets = [0, 3], sizes = [1, 64], strides = [1, 1]} : vector<1x68xf32> to vector<1x64xf32>
    %25 = vector.broadcast %23 : vector<32x1xf32> to vector<32x64xf32>
    %26 = vector.broadcast %24 : vector<1x64xf32> to vector<32x64xf32>
    %27 = arith.mulf %25, %26 : vector<32x64xf32>
    %28 = arith.addf %21, %27 : vector<32x64xf32>
    %c4 = arith.constant 4 : index
    %c0_11 = arith.constant 0 : index
    %c0_12 = arith.constant 0 : index
    %29 = vector.load %arg2[%c4, %c0_11, %c0_12] : memref<5x32x1xf32, #tpu.memory_space<vmem>>, vector<1x32x1xf32>
    %30 = vector.shape_cast %29 : vector<1x32x1xf32> to vector<32x1xf32>
    %31 = vector.extract_strided_slice %1 {offsets = [0, 4], sizes = [1, 64], strides = [1, 1]} : vector<1x68xf32> to vector<1x64xf32>
    %32 = vector.broadcast %30 : vector<32x1xf32> to vector<32x64xf32>
    %33 = vector.broadcast %31 : vector<1x64xf32> to vector<32x64xf32>
    %34 = arith.mulf %32, %33 : vector<32x64xf32>
    %35 = arith.addf %28, %34 : vector<32x64xf32>
    %c1_13 = arith.constant 1 : index
    %c0_14 = arith.constant 0 : index
    %c0_15 = arith.constant 0 : index
    %36 = vector.load %arg1[%c1_13, %c0_14, %c0_15] : memref<2x1x68xf32, #tpu.memory_space<vmem>>, vector<1x1x68xf32>
    %37 = vector.shape_cast %36 : vector<1x1x68xf32> to vector<1x68xf32>
    %c0_16 = arith.constant 0 : index
    %c0_17 = arith.constant 0 : index
    %c0_18 = arith.constant 0 : index
    %38 = vector.load %arg2[%c0_16, %c0_17, %c0_18] : memref<5x32x1xf32, #tpu.memory_space<vmem>>, vector<1x32x1xf32>
    %39 = vector.shape_cast %38 : vector<1x32x1xf32> to vector<32x1xf32>
    %40 = vector.extract_strided_slice %37 {offsets = [0, 0], sizes = [1, 64], strides = [1, 1]} : vector<1x68xf32> to vector<1x64xf32>
    %41 = vector.broadcast %39 : vector<32x1xf32> to vector<32x64xf32>
    %42 = vector.broadcast %40 : vector<1x64xf32> to vector<32x64xf32>
    %43 = arith.mulf %41, %42 : vector<32x64xf32>
    %c1_19 = arith.constant 1 : index
    %c0_20 = arith.constant 0 : index
    %c0_21 = arith.constant 0 : index
    %44 = vector.load %arg2[%c1_19, %c0_20, %c0_21] : memref<5x32x1xf32, #tpu.memory_space<vmem>>, vector<1x32x1xf32>
    %45 = vector.shape_cast %44 : vector<1x32x1xf32> to vector<32x1xf32>
    %46 = vector.extract_strided_slice %37 {offsets = [0, 1], sizes = [1, 64], strides = [1, 1]} : vector<1x68xf32> to vector<1x64xf32>
    %47 = vector.broadcast %45 : vector<32x1xf32> to vector<32x64xf32>
    %48 = vector.broadcast %46 : vector<1x64xf32> to vector<32x64xf32>
    %49 = arith.mulf %47, %48 : vector<32x64xf32>
    %50 = arith.addf %43, %49 : vector<32x64xf32>
    %c2_22 = arith.constant 2 : index
    %c0_23 = arith.constant 0 : index
    %c0_24 = arith.constant 0 : index
    %51 = vector.load %arg2[%c2_22, %c0_23, %c0_24] : memref<5x32x1xf32, #tpu.memory_space<vmem>>, vector<1x32x1xf32>
    %52 = vector.shape_cast %51 : vector<1x32x1xf32> to vector<32x1xf32>
    %53 = vector.extract_strided_slice %37 {offsets = [0, 2], sizes = [1, 64], strides = [1, 1]} : vector<1x68xf32> to vector<1x64xf32>
    %54 = vector.broadcast %52 : vector<32x1xf32> to vector<32x64xf32>
    %55 = vector.broadcast %53 : vector<1x64xf32> to vector<32x64xf32>
    %56 = arith.mulf %54, %55 : vector<32x64xf32>
    %57 = arith.addf %50, %56 : vector<32x64xf32>
    %c3_25 = arith.constant 3 : index
    %c0_26 = arith.constant 0 : index
    %c0_27 = arith.constant 0 : index
    %58 = vector.load %arg2[%c3_25, %c0_26, %c0_27] : memref<5x32x1xf32, #tpu.memory_space<vmem>>, vector<1x32x1xf32>
    %59 = vector.shape_cast %58 : vector<1x32x1xf32> to vector<32x1xf32>
    %60 = vector.extract_strided_slice %37 {offsets = [0, 3], sizes = [1, 64], strides = [1, 1]} : vector<1x68xf32> to vector<1x64xf32>
    %61 = vector.broadcast %59 : vector<32x1xf32> to vector<32x64xf32>
    %62 = vector.broadcast %60 : vector<1x64xf32> to vector<32x64xf32>
    %63 = arith.mulf %61, %62 : vector<32x64xf32>
    %64 = arith.addf %57, %63 : vector<32x64xf32>
    %c4_28 = arith.constant 4 : index
    %c0_29 = arith.constant 0 : index
    %c0_30 = arith.constant 0 : index
    %65 = vector.load %arg2[%c4_28, %c0_29, %c0_30] : memref<5x32x1xf32, #tpu.memory_space<vmem>>, vector<1x32x1xf32>
    %66 = vector.shape_cast %65 : vector<1x32x1xf32> to vector<32x1xf32>
    %67 = vector.extract_strided_slice %37 {offsets = [0, 4], sizes = [1, 64], strides = [1, 1]} : vector<1x68xf32> to vector<1x64xf32>
    %68 = vector.broadcast %66 : vector<32x1xf32> to vector<32x64xf32>
    %69 = vector.broadcast %67 : vector<1x64xf32> to vector<32x64xf32>
    %70 = arith.mulf %68, %69 : vector<32x64xf32>
    %71 = arith.addf %64, %70 : vector<32x64xf32>
    %cst = arith.constant dense<0.000000e+00> : vector<32xf32>
    %72 = vector.multi_reduction <add>, %35, %cst [1] : vector<32x64xf32> to vector<32xf32>
    %73 = vector.shape_cast %72 : vector<32xf32> to vector<32x1xf32>
    %74 = arith.mulf %35, %35 : vector<32x64xf32>
    %cst_31 = arith.constant dense<0.000000e+00> : vector<32xf32>
    %75 = vector.multi_reduction <add>, %74, %cst_31 [1] : vector<32x64xf32> to vector<32xf32>
    %76 = vector.shape_cast %75 : vector<32xf32> to vector<32x1xf32>
    %cst_32 = arith.constant dense<0.000000e+00> : vector<32xf32>
    %77 = vector.multi_reduction <add>, %71, %cst_32 [1] : vector<32x64xf32> to vector<32xf32>
    %78 = vector.shape_cast %77 : vector<32xf32> to vector<32x1xf32>
    %79 = arith.addf %73, %78 : vector<32x1xf32>
    %80 = arith.mulf %71, %71 : vector<32x64xf32>
    %cst_33 = arith.constant dense<0.000000e+00> : vector<32xf32>
    %81 = vector.multi_reduction <add>, %80, %cst_33 [1] : vector<32x64xf32> to vector<32xf32>
    %82 = vector.shape_cast %81 : vector<32xf32> to vector<32x1xf32>
    %83 = arith.addf %76, %82 : vector<32x1xf32>
    %cst_34 = arith.constant 7.812500e-03 : f32
    %84 = vector.broadcast %cst_34 : f32 to vector<32x1xf32>
    %85 = arith.mulf %79, %84 : vector<32x1xf32>
    %cst_35 = arith.constant 7.812500e-03 : f32
    %86 = vector.broadcast %cst_35 : f32 to vector<32x1xf32>
    %87 = arith.mulf %83, %86 : vector<32x1xf32>
    %88 = arith.mulf %85, %85 : vector<32x1xf32>
    %89 = arith.subf %87, %88 : vector<32x1xf32>
    %c0_36 = arith.constant 0 : index
    %c0_37 = arith.constant 0 : index
    %90 = vector.load %arg4[%c0_36, %c0_37] : memref<32x2xf32, #tpu.memory_space<vmem>>, vector<32x1xf32>
    %cst_38 = arith.constant 9.99999974E-6 : f32
    %91 = vector.broadcast %cst_38 : f32 to vector<32x1xf32>
    %92 = arith.addf %89, %91 : vector<32x1xf32>
    %93 = math.rsqrt %92 : vector<32x1xf32>
    %94 = arith.mulf %90, %93 : vector<32x1xf32>
    %c0_39 = arith.constant 0 : index
    %c1_40 = arith.constant 1 : index
    %95 = vector.load %arg4[%c0_39, %c1_40] : memref<32x2xf32, #tpu.memory_space<vmem>>, vector<32x1xf32>
    %96 = arith.mulf %85, %94 : vector<32x1xf32>
    %97 = arith.subf %95, %96 : vector<32x1xf32>
    %cst_41 = arith.constant 0.000000e+00 : f32
    %98 = vector.broadcast %cst_41 : f32 to vector<32x68xf32>
    %c0_42 = arith.constant 0 : index
    %c0_43 = arith.constant 0 : index
    %99 = vector.load %arg7[%c0_42, %c0_43] : memref<32x68xf32, #tpu.memory_space<vmem>>, vector<32x68xf32>
    tpu.vector_store %arg7[%c0_42, %c0_43], %98 {strides = array<i32>} : memref<32x68xf32, #tpu.memory_space<vmem>>, vector<32x68xf32>,
    %100 = vector.broadcast %94 : vector<32x1xf32> to vector<32x64xf32>
    %101 = arith.mulf %35, %100 : vector<32x64xf32>
    %102 = vector.broadcast %97 : vector<32x1xf32> to vector<32x64xf32>
    %103 = arith.addf %101, %102 : vector<32x64xf32>
    %cst_44 = arith.constant 0.000000e+00 : f32
    %104 = vector.broadcast %cst_44 : f32 to vector<32x64xf32>
    %105 = arith.maximumf %103, %104 : vector<32x64xf32>
    %c0_45 = arith.constant 0 : index
    %c2_46 = arith.constant 2 : index
    %106 = vector.load %arg7[%c0_45, %c2_46] : memref<32x68xf32, #tpu.memory_space<vmem>>, vector<32x64xf32>
    tpu.vector_store %arg7[%c0_45, %c2_46], %105 {strides = array<i32>} : memref<32x68xf32, #tpu.memory_space<vmem>>, vector<32x64xf32>,
    %c0_47 = arith.constant 0 : index
    %c0_48 = arith.constant 0 : index
    %c0_49 = arith.constant 0 : index
    %107 = vector.load %arg3[%c0_47, %c0_48, %c0_49] : memref<5x1x32xf32, #tpu.memory_space<vmem>>, vector<1x1x32xf32>
    %108 = vector.shape_cast %107 : vector<1x1x32xf32> to vector<1x32xf32>
    %c0_50 = arith.constant 0 : index
    %c0_51 = arith.constant 0 : index
    %109 = vector.load %arg7[%c0_50, %c0_51] : memref<32x68xf32, #tpu.memory_space<vmem>>, vector<32x64xf32>
    %cst_52 = arith.constant dense<0.000000e+00> : vector<1x64xf32>
    %110 = tpu.matmul %108, %109, %cst_52 {dimension_numbers = #tpu.dot_dimension_numbers<[1], [0], [0], [1], [0, 0, 1, 1], [], []>} : vector<1x32xf32>, vector<32x64xf32>, vector<1x64xf32> -> vector<1x64xf32>
    %c1_53 = arith.constant 1 : index
    %c0_54 = arith.constant 0 : index
    %c0_55 = arith.constant 0 : index
    %111 = vector.load %arg3[%c1_53, %c0_54, %c0_55] : memref<5x1x32xf32, #tpu.memory_space<vmem>>, vector<1x1x32xf32>
    %112 = vector.shape_cast %111 : vector<1x1x32xf32> to vector<1x32xf32>
    %c0_56 = arith.constant 0 : index
    %c1_57 = arith.constant 1 : index
    %113 = vector.load %arg7[%c0_56, %c1_57] : memref<32x68xf32, #tpu.memory_space<vmem>>, vector<32x64xf32>
    %cst_58 = arith.constant dense<0.000000e+00> : vector<1x64xf32>
    %114 = tpu.matmul %112, %113, %cst_58 {dimension_numbers = #tpu.dot_dimension_numbers<[1], [0], [0], [1], [0, 0, 1, 1], [], []>} : vector<1x32xf32>, vector<32x64xf32>, vector<1x64xf32> -> vector<1x64xf32>
    %115 = arith.addf %110, %114 : vector<1x64xf32>
    %c2_59 = arith.constant 2 : index
    %c0_60 = arith.constant 0 : index
    %c0_61 = arith.constant 0 : index
    %116 = vector.load %arg3[%c2_59, %c0_60, %c0_61] : memref<5x1x32xf32, #tpu.memory_space<vmem>>, vector<1x1x32xf32>
    %117 = vector.shape_cast %116 : vector<1x1x32xf32> to vector<1x32xf32>
    %c0_62 = arith.constant 0 : index
    %c2_63 = arith.constant 2 : index
    %118 = vector.load %arg7[%c0_62, %c2_63] : memref<32x68xf32, #tpu.memory_space<vmem>>, vector<32x64xf32>
    %cst_64 = arith.constant dense<0.000000e+00> : vector<1x64xf32>
    %119 = tpu.matmul %117, %118, %cst_64 {dimension_numbers = #tpu.dot_dimension_numbers<[1], [0], [0], [1], [0, 0, 1, 1], [], []>} : vector<1x32xf32>, vector<32x64xf32>, vector<1x64xf32> -> vector<1x64xf32>
    %120 = arith.addf %115, %119 : vector<1x64xf32>
    %c3_65 = arith.constant 3 : index
    %c0_66 = arith.constant 0 : index
    %c0_67 = arith.constant 0 : index
    %121 = vector.load %arg3[%c3_65, %c0_66, %c0_67] : memref<5x1x32xf32, #tpu.memory_space<vmem>>, vector<1x1x32xf32>
    %122 = vector.shape_cast %121 : vector<1x1x32xf32> to vector<1x32xf32>
    %c0_68 = arith.constant 0 : index
    %c3_69 = arith.constant 3 : index
    %123 = vector.load %arg7[%c0_68, %c3_69] : memref<32x68xf32, #tpu.memory_space<vmem>>, vector<32x64xf32>
    %cst_70 = arith.constant dense<0.000000e+00> : vector<1x64xf32>
    %124 = tpu.matmul %122, %123, %cst_70 {dimension_numbers = #tpu.dot_dimension_numbers<[1], [0], [0], [1], [0, 0, 1, 1], [], []>} : vector<1x32xf32>, vector<32x64xf32>, vector<1x64xf32> -> vector<1x64xf32>
    %125 = arith.addf %120, %124 : vector<1x64xf32>
    %c4_71 = arith.constant 4 : index
    %c0_72 = arith.constant 0 : index
    %c0_73 = arith.constant 0 : index
    %126 = vector.load %arg3[%c4_71, %c0_72, %c0_73] : memref<5x1x32xf32, #tpu.memory_space<vmem>>, vector<1x1x32xf32>
    %127 = vector.shape_cast %126 : vector<1x1x32xf32> to vector<1x32xf32>
    %c0_74 = arith.constant 0 : index
    %c4_75 = arith.constant 4 : index
    %128 = vector.load %arg7[%c0_74, %c4_75] : memref<32x68xf32, #tpu.memory_space<vmem>>, vector<32x64xf32>
    %cst_76 = arith.constant dense<0.000000e+00> : vector<1x64xf32>
    %129 = tpu.matmul %127, %128, %cst_76 {dimension_numbers = #tpu.dot_dimension_numbers<[1], [0], [0], [1], [0, 0, 1, 1], [], []>} : vector<1x32xf32>, vector<32x64xf32>, vector<1x64xf32> -> vector<1x64xf32>
    %130 = arith.addf %125, %129 : vector<1x64xf32>
    %131 = vector.broadcast %94 : vector<32x1xf32> to vector<32x64xf32>
    %132 = arith.mulf %71, %131 : vector<32x64xf32>
    %133 = vector.broadcast %97 : vector<32x1xf32> to vector<32x64xf32>
    %134 = arith.addf %132, %133 : vector<32x64xf32>
    %cst_77 = arith.constant 0.000000e+00 : f32
    %135 = vector.broadcast %cst_77 : f32 to vector<32x64xf32>
    %136 = arith.maximumf %134, %135 : vector<32x64xf32>
    %c0_78 = arith.constant 0 : index
    %c2_79 = arith.constant 2 : index
    %137 = vector.load %arg7[%c0_78, %c2_79] : memref<32x68xf32, #tpu.memory_space<vmem>>, vector<32x64xf32>
    tpu.vector_store %arg7[%c0_78, %c2_79], %136 {strides = array<i32>} : memref<32x68xf32, #tpu.memory_space<vmem>>, vector<32x64xf32>,
    %c0_80 = arith.constant 0 : index
    %c0_81 = arith.constant 0 : index
    %c0_82 = arith.constant 0 : index
    %138 = vector.load %arg3[%c0_80, %c0_81, %c0_82] : memref<5x1x32xf32, #tpu.memory_space<vmem>>, vector<1x1x32xf32>
    %139 = vector.shape_cast %138 : vector<1x1x32xf32> to vector<1x32xf32>
    %c0_83 = arith.constant 0 : index
    %c0_84 = arith.constant 0 : index
    %140 = vector.load %arg7[%c0_83, %c0_84] : memref<32x68xf32, #tpu.memory_space<vmem>>, vector<32x64xf32>
    %cst_85 = arith.constant dense<0.000000e+00> : vector<1x64xf32>
    %141 = tpu.matmul %139, %140, %cst_85 {dimension_numbers = #tpu.dot_dimension_numbers<[1], [0], [0], [1], [0, 0, 1, 1], [], []>} : vector<1x32xf32>, vector<32x64xf32>, vector<1x64xf32> -> vector<1x64xf32>
    %c1_86 = arith.constant 1 : index
    %c0_87 = arith.constant 0 : index
    %c0_88 = arith.constant 0 : index
    %142 = vector.load %arg3[%c1_86, %c0_87, %c0_88] : memref<5x1x32xf32, #tpu.memory_space<vmem>>, vector<1x1x32xf32>
    %143 = vector.shape_cast %142 : vector<1x1x32xf32> to vector<1x32xf32>
    %c0_89 = arith.constant 0 : index
    %c1_90 = arith.constant 1 : index
    %144 = vector.load %arg7[%c0_89, %c1_90] : memref<32x68xf32, #tpu.memory_space<vmem>>, vector<32x64xf32>
    %cst_91 = arith.constant dense<0.000000e+00> : vector<1x64xf32>
    %145 = tpu.matmul %143, %144, %cst_91 {dimension_numbers = #tpu.dot_dimension_numbers<[1], [0], [0], [1], [0, 0, 1, 1], [], []>} : vector<1x32xf32>, vector<32x64xf32>, vector<1x64xf32> -> vector<1x64xf32>
    %146 = arith.addf %141, %145 : vector<1x64xf32>
    %c2_92 = arith.constant 2 : index
    %c0_93 = arith.constant 0 : index
    %c0_94 = arith.constant 0 : index
    %147 = vector.load %arg3[%c2_92, %c0_93, %c0_94] : memref<5x1x32xf32, #tpu.memory_space<vmem>>, vector<1x1x32xf32>
    %148 = vector.shape_cast %147 : vector<1x1x32xf32> to vector<1x32xf32>
    %c0_95 = arith.constant 0 : index
    %c2_96 = arith.constant 2 : index
    %149 = vector.load %arg7[%c0_95, %c2_96] : memref<32x68xf32, #tpu.memory_space<vmem>>, vector<32x64xf32>
    %cst_97 = arith.constant dense<0.000000e+00> : vector<1x64xf32>
    %150 = tpu.matmul %148, %149, %cst_97 {dimension_numbers = #tpu.dot_dimension_numbers<[1], [0], [0], [1], [0, 0, 1, 1], [], []>} : vector<1x32xf32>, vector<32x64xf32>, vector<1x64xf32> -> vector<1x64xf32>
    %151 = arith.addf %146, %150 : vector<1x64xf32>
    %c3_98 = arith.constant 3 : index
    %c0_99 = arith.constant 0 : index
    %c0_100 = arith.constant 0 : index
    %152 = vector.load %arg3[%c3_98, %c0_99, %c0_100] : memref<5x1x32xf32, #tpu.memory_space<vmem>>, vector<1x1x32xf32>
    %153 = vector.shape_cast %152 : vector<1x1x32xf32> to vector<1x32xf32>
    %c0_101 = arith.constant 0 : index
    %c3_102 = arith.constant 3 : index
    %154 = vector.load %arg7[%c0_101, %c3_102] : memref<32x68xf32, #tpu.memory_space<vmem>>, vector<32x64xf32>
    %cst_103 = arith.constant dense<0.000000e+00> : vector<1x64xf32>
    %155 = tpu.matmul %153, %154, %cst_103 {dimension_numbers = #tpu.dot_dimension_numbers<[1], [0], [0], [1], [0, 0, 1, 1], [], []>} : vector<1x32xf32>, vector<32x64xf32>, vector<1x64xf32> -> vector<1x64xf32>
    %156 = arith.addf %151, %155 : vector<1x64xf32>
    %c4_104 = arith.constant 4 : index
    %c0_105 = arith.constant 0 : index
    %c0_106 = arith.constant 0 : index
    %157 = vector.load %arg3[%c4_104, %c0_105, %c0_106] : memref<5x1x32xf32, #tpu.memory_space<vmem>>, vector<1x1x32xf32>
    %158 = vector.shape_cast %157 : vector<1x1x32xf32> to vector<1x32xf32>
    %c0_107 = arith.constant 0 : index
    %c4_108 = arith.constant 4 : index
    %159 = vector.load %arg7[%c0_107, %c4_108] : memref<32x68xf32, #tpu.memory_space<vmem>>, vector<32x64xf32>
    %cst_109 = arith.constant dense<0.000000e+00> : vector<1x64xf32>
    %160 = tpu.matmul %158, %159, %cst_109 {dimension_numbers = #tpu.dot_dimension_numbers<[1], [0], [0], [1], [0, 0, 1, 1], [], []>} : vector<1x32xf32>, vector<32x64xf32>, vector<1x64xf32> -> vector<1x64xf32>
    %161 = arith.addf %156, %160 : vector<1x64xf32>
    %cst_110 = arith.constant dense<0.000000e+00> : vector<1xf32>
    %162 = vector.multi_reduction <add>, %130, %cst_110 [1] : vector<1x64xf32> to vector<1xf32>
    %163 = vector.shape_cast %162 : vector<1xf32> to vector<1x1xf32>
    %164 = arith.mulf %130, %130 : vector<1x64xf32>
    %cst_111 = arith.constant dense<0.000000e+00> : vector<1xf32>
    %165 = vector.multi_reduction <add>, %164, %cst_111 [1] : vector<1x64xf32> to vector<1xf32>
    %166 = vector.shape_cast %165 : vector<1xf32> to vector<1x1xf32>
    %cst_112 = arith.constant dense<0.000000e+00> : vector<1xf32>
    %167 = vector.multi_reduction <add>, %161, %cst_112 [1] : vector<1x64xf32> to vector<1xf32>
    %168 = vector.shape_cast %167 : vector<1xf32> to vector<1x1xf32>
    %169 = arith.addf %163, %168 : vector<1x1xf32>
    %170 = arith.mulf %161, %161 : vector<1x64xf32>
    %cst_113 = arith.constant dense<0.000000e+00> : vector<1xf32>
    %171 = vector.multi_reduction <add>, %170, %cst_113 [1] : vector<1x64xf32> to vector<1xf32>
    %172 = vector.shape_cast %171 : vector<1xf32> to vector<1x1xf32>
    %173 = arith.addf %166, %172 : vector<1x1xf32>
    %cst_114 = arith.constant 7.812500e-03 : f32
    %174 = vector.broadcast %cst_114 : f32 to vector<1x1xf32>
    %175 = arith.mulf %169, %174 : vector<1x1xf32>
    %cst_115 = arith.constant 7.812500e-03 : f32
    %176 = vector.broadcast %cst_115 : f32 to vector<1x1xf32>
    %177 = arith.mulf %173, %176 : vector<1x1xf32>
    %178 = arith.mulf %175, %175 : vector<1x1xf32>
    %179 = arith.subf %177, %178 : vector<1x1xf32>
    %c0_116 = arith.constant 0 : index
    %c0_117 = arith.constant 0 : index
    %180 = vector.load %arg5[%c0_116, %c0_117] : memref<1x3xf32, #tpu.memory_space<vmem>>, vector<1x1xf32>
    %cst_118 = arith.constant 9.99999974E-6 : f32
    %181 = vector.broadcast %cst_118 : f32 to vector<1x1xf32>
    %182 = arith.addf %179, %181 : vector<1x1xf32>
    %183 = math.rsqrt %182 : vector<1x1xf32>
    %184 = arith.mulf %180, %183 : vector<1x1xf32>
    %c0_119 = arith.constant 0 : index
    %c1_120 = arith.constant 1 : index
    %185 = vector.load %arg5[%c0_119, %c1_120] : memref<1x3xf32, #tpu.memory_space<vmem>>, vector<1x1xf32>
    %186 = arith.mulf %175, %184 : vector<1x1xf32>
    %187 = arith.subf %185, %186 : vector<1x1xf32>
    %188 = vector.broadcast %184 : vector<1x1xf32> to vector<1x64xf32>
    %189 = arith.mulf %130, %188 : vector<1x64xf32>
    %190 = vector.broadcast %187 : vector<1x1xf32> to vector<1x64xf32>
    %191 = arith.addf %189, %190 : vector<1x64xf32>
    %cst_121 = arith.constant 0.000000e+00 : f32
    %192 = vector.broadcast %cst_121 : f32 to vector<1x64xf32>
    %193 = arith.maximumf %191, %192 : vector<1x64xf32>
    %c0_122 = arith.constant 0 : index
    %c0_123 = arith.constant 0 : index
    %c0_124 = arith.constant 0 : index
    %194 = vector.load %arg6[%c0_122, %c0_123, %c0_124] : memref<2x1x64xf32, #tpu.memory_space<vmem>>, vector<1x1x64xf32>
    %195 = vector.shape_cast %194 : vector<1x1x64xf32> to vector<1x64xf32>
    %196 = vector.shape_cast %193 : vector<1x64xf32> to vector<1x1x64xf32>
    tpu.vector_store %arg6[%c0_122, %c0_123, %c0_124], %196 {strides = array<i32>} : memref<2x1x64xf32, #tpu.memory_space<vmem>>, vector<1x1x64xf32>,
    %197 = vector.broadcast %184 : vector<1x1xf32> to vector<1x64xf32>
    %198 = arith.mulf %161, %197 : vector<1x64xf32>
    %199 = vector.broadcast %187 : vector<1x1xf32> to vector<1x64xf32>
    %200 = arith.addf %198, %199 : vector<1x64xf32>
    %cst_125 = arith.constant 0.000000e+00 : f32
    %201 = vector.broadcast %cst_125 : f32 to vector<1x64xf32>
    %202 = arith.maximumf %200, %201 : vector<1x64xf32>
    %c1_126 = arith.constant 1 : index
    %c0_127 = arith.constant 0 : index
    %c0_128 = arith.constant 0 : index
    %203 = vector.load %arg6[%c1_126, %c0_127, %c0_128] : memref<2x1x64xf32, #tpu.memory_space<vmem>>, vector<1x1x64xf32>
    %204 = vector.shape_cast %203 : vector<1x1x64xf32> to vector<1x64xf32>
    %205 = vector.shape_cast %202 : vector<1x64xf32> to vector<1x1x64xf32>
    tpu.vector_store %arg6[%c1_126, %c0_127, %c0_128], %205 {strides = array<i32>} : memref<2x1x64xf32, #tpu.memory_space<vmem>>, vector<1x1x64xf32>,
    return
  }
  func.func @transform_0(%arg0: i32) -> (i32, i32, i32) {
    %c0_i32 = arith.constant 0 : i32
    %c0_i32_0 = arith.constant 0 : i32
    %c0_i32_1 = arith.constant 0 : i32
    %c0_i32_2 = arith.constant 0 : i32
    return %c0_i32, %c0_i32_0, %c0_i32_1 : i32, i32, i32
  }
  func.func @transform_1(%arg0: i32) -> (i32, i32, i32) {
    %c0_i32 = arith.constant 0 : i32
    %c0_i32_0 = arith.constant 0 : i32
    %c0_i32_1 = arith.constant 0 : i32
    %c0_i32_2 = arith.constant 0 : i32
    return %c0_i32, %c0_i32_0, %c0_i32_1 : i32, i32, i32
  }
  func.func @transform_2(%arg0: i32) -> (i32, i32, i32) {
    %c0_i32 = arith.constant 0 : i32
    %c0_i32_0 = arith.constant 0 : i32
    %c0_i32_1 = arith.constant 0 : i32
    %c0_i32_2 = arith.constant 0 : i32
    return %c0_i32, %c0_i32_0, %c0_i32_1 : i32, i32, i32
  }
  func.func @transform_3(%arg0: i32) -> (i32, i32) {
    %c0_i32 = arith.constant 0 : i32
    %c0_i32_0 = arith.constant 0 : i32
    %c0_i32_1 = arith.constant 0 : i32
    return %c0_i32, %c0_i32_0 : i32, i32
  }
  func.func @transform_4(%arg0: i32) -> (i32, i32) {
    %c0_i32 = arith.constant 0 : i32
    %c0_i32_0 = arith.constant 0 : i32
    %c0_i32_1 = arith.constant 0 : i32
    return %c0_i32, %c0_i32_0 : i32, i32
  }
  func.func @transform_5(%arg0: i32) -> (i32, i32, i32) {
    %c0_i32 = arith.constant 0 : i32
    %c0_i32_0 = arith.constant 0 : i32
    %c0_i32_1 = arith.constant 0 : i32
    %c0_i32_2 = arith.constant 0 : i32
    return %c0_i32, %c0_i32_0, %c0_i32_1 : i32, i32, i32
  }
}

</mosaic_0001>

<llo_original>
// kernel: tpu_custom_call.1
$region0: #{tpu_custom_call.1}
  #allocation0 [shape = 'u32[]', space=smem, size = 0x4, offset = 0x4, fixed_abs, tag = 'smem constant byte address 0x4 - core index']
  #allocation1 [shape = 'u32[144,128]{1,0:T(1,128)}', space=vmem, size = 0x12000, scoped, tag = 'internal scratch']
  #allocation2 [shape = 'f32[32,68]{1,0:T(8,128)}', space=vmem, size = 0x4000, scoped, tag = 'scratch operand']
  %s0 = inlined_call_operand.vmem [shape: f32[2,1,68], index: 0, kind: input, shape index: {}]
  %s1 = inlined_call_operand.vmem [shape: f32[5,32,1], index: 1, kind: input, shape index: {}]
  %s2 = inlined_call_operand.vmem [shape: f32[5,1,32], index: 2, kind: input, shape index: {}]
  %s3 = inlined_call_operand.vmem [shape: f32[32,2], index: 3, kind: input, shape index: {}]
  %s4 = inlined_call_operand.vmem [shape: f32[1,3], index: 4, kind: input, shape index: {}]
  %s5 = inlined_call_operand.hbm [shape: f32[2,1,64], index: 5, kind: output, shape index: {}]
  %s6 = sld [smem:[#allocation0]]
  $region30: #{tpu_custom_call.1} parent=0
    _
  %s8 = ssub.s32 1, %s6
  %s9 = scalar_select 0, %s8, %s6
  $region1: #{tpu_custom_call.1} parent=0
    #allocation3 [shape = 'u8[1024]{0}', space=vmem, size = 0x400, scoped, tag = 'output window, operand 0, single buffered']
    #allocation4 [shape = 's32[1]{0}', space=sflag, size = 0x4, scoped, tag = 'scoped memory for tpu_custom_call.1']
    %10 = vsyncpa [#allocation4], 0
    // Predicated region
    $region2: #{tpu_custom_call.1} parent=1 // pred_check
      _
    $region3: #{tpu_custom_call.1} parent=1 // pred_check_branch
      %12 = sbr.rel (0) target = $region5
    $region4: #{tpu_custom_call.1} parent=1 // pred_region
      _
    $region5: #{tpu_custom_call.1} parent=1 // pred_fallthru
      _
    // Predicated region
    $region6: #{tpu_custom_call.1} parent=1 // pred_check
      _
    $region7: #{tpu_custom_call.1} parent=1 // pred_check_branch
      %14 = sbr.rel (0) target = $region9
    $region8: #{tpu_custom_call.1} parent=1 // pred_region
      _
    $region9: #{tpu_custom_call.1} parent=1 // pred_fallthru
      _
    // Predicated region
    $region10: #{tpu_custom_call.1} parent=1 // pred_check
      _
    $region11: #{tpu_custom_call.1} parent=1 // pred_check_branch
      %16 = sbr.rel (0) target = $region13
    $region12: #{tpu_custom_call.1} parent=1 // pred_region
      _
    $region13: #{tpu_custom_call.1} parent=1 // pred_fallthru
      _
    // Predicated region
    $region14: #{tpu_custom_call.1} parent=1 // pred_check
      _
    $region15: #{tpu_custom_call.1} parent=1 // pred_check_branch
      %18 = sbr.rel (0) target = $region17
    $region16: #{tpu_custom_call.1} parent=1 // pred_region
      _
    $region17: #{tpu_custom_call.1} parent=1 // pred_fallthru
      _
    // Predicated region
    $region18: #{tpu_custom_call.1} parent=1 // pred_check
      _
    $region19: #{tpu_custom_call.1} parent=1 // pred_check_branch
      %20 = sbr.rel (0) target = $region21
    $region20: #{tpu_custom_call.1} parent=1 // pred_region
      _
    $region21: #{tpu_custom_call.1} parent=1 // pred_fallthru
      _
    %v21 = vld [vmem:[%s0] sm:$0x1]
    %v22 = vld [vmem:[%s1] sm:$0xff]
    %v23 = vld [vmem:[%s1 + $0x8] sm:$0xff]
    %v24 = vld [vmem:[%s1 + $0x10] sm:$0xff]
    %v25 = vld [vmem:[%s1 + $0x18] sm:$0xff]
    %27 = vset.pattern.permute.xlu0 0
    %28 = vperm.xlu0 %27, %v22
    %v29 = vpop.permute.xlu0 %28
    %32 = vset.pattern.permute.xlu0 0
    %33 = vperm.xlu0 %32, %v23
    %v34 = vpop.permute.xlu0 %33
    %37 = vset.pattern.permute.xlu0 0
    %38 = vperm.xlu0 %37, %v24
    %v39 = vpop.permute.xlu0 %38
    %42 = vset.pattern.permute.xlu0 0
    %43 = vperm.xlu0 %42, %v25
    %v44 = vpop.permute.xlu0 %43
    %v47 = vlaneseq
    %v48 = vshrl.u32 %v47, 7
    %v49 = vsub.s32 0, %v48
    %v50 = vrot.slane %v21, %v49
    %v52 = vmul.f32 %v29, %v50
    %v53 = vmul.f32 %v34, %v50
    %v54 = vmul.f32 %v39, %v50
    %v55 = vmul.f32 %v44, %v50
    %s56 = scalar_lea.vmem %s1, 32
    %v57 = vld [vmem:[%s56] sm:$0xff]
    %v58 = vld [vmem:[%s56 + $0x8] sm:$0xff]
    %v59 = vld [vmem:[%s56 + $0x10] sm:$0xff]
    %v60 = vld [vmem:[%s56 + $0x18] sm:$0xff]
    %62 = vset.pattern.permute.xlu0 0
    %63 = vperm.xlu0 %62, %v57
    %v64 = vpop.permute.xlu0 %63
    %67 = vset.pattern.permute.xlu0 0
    %68 = vperm.xlu0 %67, %v58
    %v69 = vpop.permute.xlu0 %68
    %72 = vset.pattern.permute.xlu0 0
    %73 = vperm.xlu0 %72, %v59
    %v74 = vpop.permute.xlu0 %73
    %77 = vset.pattern.permute.xlu0 0
    %78 = vperm.xlu0 %77, %v60
    %v79 = vpop.permute.xlu0 %78
    %v81 = vmul.f32 %v64, %v50
    %v82 = vmul.f32 %v69, %v50
    %v83 = vmul.f32 %v74, %v50
    %v84 = vmul.f32 %v79, %v50
    %89 = vrot.lane.b32.xlu0 %v81, 127
    %v90 = vpop.permute.xlu0 %89
    %91 = vrot.lane.b32.xlu0 %v82, 127
    %v92 = vpop.permute.xlu0 %91
    %93 = vrot.lane.b32.xlu0 %v83, 127
    %v94 = vpop.permute.xlu0 %93
    %95 = vrot.lane.b32.xlu0 %v84, 127
    %v96 = vpop.permute.xlu0 %95
    %v101 = vadd.f32 %v52, %v90
    %v102 = vadd.f32 %v53, %v92
    %v103 = vadd.f32 %v54, %v94
    %v104 = vadd.f32 %v55, %v96
    %s105 = scalar_lea.vmem %s1, 64
    %v106 = vld [vmem:[%s105] sm:$0xff]
    %v107 = vld [vmem:[%s105 + $0x8] sm:$0xff]
    %v108 = vld [vmem:[%s105 + $0x10] sm:$0xff]
    %v109 = vld [vmem:[%s105 + $0x18] sm:$0xff]
    %111 = vset.pattern.permute.xlu0 0
    %112 = vperm.xlu0 %111, %v106
    %v113 = vpop.permute.xlu0 %112
    %116 = vset.pattern.permute.xlu0 0
    %117 = vperm.xlu0 %116, %v107
    %v118 = vpop.permute.xlu0 %117
    %121 = vset.pattern.permute.xlu0 0
    %122 = vperm.xlu0 %121, %v108
    %v123 = vpop.permute.xlu0 %122
    %126 = vset.pattern.permute.xlu0 0
    %127 = vperm.xlu0 %126, %v109
    %v128 = vpop.permute.xlu0 %127
    %v130 = vmul.f32 %v113, %v50
    %v131 = vmul.f32 %v118, %v50
    %v132 = vmul.f32 %v123, %v50
    %v133 = vmul.f32 %v128, %v50
    %138 = vrot.lane.b32.xlu0 %v130, 126
    %v139 = vpop.permute.xlu0 %138
    %140 = vrot.lane.b32.xlu0 %v131, 126
    %v141 = vpop.permute.xlu0 %140
    %142 = vrot.lane.b32.xlu0 %v132, 126
    %v143 = vpop.permute.xlu0 %142
    %144 = vrot.lane.b32.xlu0 %v133, 126
    %v145 = vpop.permute.xlu0 %144
    %v150 = vadd.f32 %v101, %v139
    %v151 = vadd.f32 %v102, %v141
    %v152 = vadd.f32 %v103, %v143
    %v153 = vadd.f32 %v104, %v145
    %s154 = scalar_lea.vmem %s1, 96
    %v155 = vld [vmem:[%s154] sm:$0xff]
    %v156 = vld [vmem:[%s154 + $0x8] sm:$0xff]
    %v157 = vld [vmem:[%s154 + $0x10] sm:$0xff]
    %v158 = vld [vmem:[%s154 + $0x18] sm:$0xff]
    %160 = vset.pattern.permute.xlu0 0
    %161 = vperm.xlu0 %160, %v155
    %v162 = vpop.permute.xlu0 %161
    %165 = vset.pattern.permute.xlu0 0
    %166 = vperm.xlu0 %165, %v156
    %v167 = vpop.permute.xlu0 %166
    %170 = vset.pattern.permute.xlu0 0
    %171 = vperm.xlu0 %170, %v157
    %v172 = vpop.permute.xlu0 %171
    %175 = vset.pattern.permute.xlu0 0
    %176 = vperm.xlu0 %175, %v158
    %v177 = vpop.permute.xlu0 %176
    %v179 = vmul.f32 %v162, %v50
    %v180 = vmul.f32 %v167, %v50
    %v181 = vmul.f32 %v172, %v50
    %v182 = vmul.f32 %v177, %v50
    %187 = vrot.lane.b32.xlu0 %v179, 125
    %v188 = vpop.permute.xlu0 %187
    %189 = vrot.lane.b32.xlu0 %v180, 125
    %v190 = vpop.permute.xlu0 %189
    %191 = vrot.lane.b32.xlu0 %v181, 125
    %v192 = vpop.permute.xlu0 %191
    %193 = vrot.lane.b32.xlu0 %v182, 125
    %v194 = vpop.permute.xlu0 %193
    %v199 = vadd.f32 %v150, %v188
    %v200 = vadd.f32 %v151, %v190
    %v201 = vadd.f32 %v152, %v192
    %v202 = vadd.f32 %v153, %v194
    %s203 = scalar_lea.vmem %s1, 128
    %v204 = vld [vmem:[%s203] sm:$0xff]
    %v205 = vld [vmem:[%s203 + $0x8] sm:$0xff]
    %v206 = vld [vmem:[%s203 + $0x10] sm:$0xff]
    %v207 = vld [vmem:[%s203 + $0x18] sm:$0xff]
    %209 = vset.pattern.permute.xlu0 0
    %210 = vperm.xlu0 %209, %v204
    %v211 = vpop.permute.xlu0 %210
    %214 = vset.pattern.permute.xlu0 0
    %215 = vperm.xlu0 %214, %v205
    %v216 = vpop.permute.xlu0 %215
    %219 = vset.pattern.permute.xlu0 0
    %220 = vperm.xlu0 %219, %v206
    %v221 = vpop.permute.xlu0 %220
    %224 = vset.pattern.permute.xlu0 0
    %225 = vperm.xlu0 %224, %v207
    %v226 = vpop.permute.xlu0 %225
    %v228 = vmul.f32 %v211, %v50
    %v229 = vmul.f32 %v216, %v50
    %v230 = vmul.f32 %v221, %v50
    %v231 = vmul.f32 %v226, %v50
    %236 = vrot.lane.b32.xlu0 %v228, 124
    %v237 = vpop.permute.xlu0 %236
    %238 = vrot.lane.b32.xlu0 %v229, 124
    %v239 = vpop.permute.xlu0 %238
    %240 = vrot.lane.b32.xlu0 %v230, 124
    %v241 = vpop.permute.xlu0 %240
    %242 = vrot.lane.b32.xlu0 %v231, 124
    %v243 = vpop.permute.xlu0 %242
    %v248 = vadd.f32 %v199, %v237
    %v249 = vadd.f32 %v200, %v239
    %v250 = vadd.f32 %v201, %v241
    %v251 = vadd.f32 %v202, %v243
    %s252 = scalar_lea.vmem %s0, 1
    %v253 = vld [vmem:[%s252] sm:$0x1]
    %v255 = vlaneseq
    %v256 = vshrl.u32 %v255, 7
    %v257 = vsub.s32 0, %v256
    %v258 = vrot.slane %v253, %v257
    %v260 = vmul.f32 %v29, %v258
    %v261 = vmul.f32 %v34, %v258
    %v262 = vmul.f32 %v39, %v258
    %v263 = vmul.f32 %v44, %v258
    %v264 = vmul.f32 %v64, %v258
    %v265 = vmul.f32 %v69, %v258
    %v266 = vmul.f32 %v74, %v258
    %v267 = vmul.f32 %v79, %v258
    %272 = vrot.lane.b32.xlu0 %v264, 127
    %v273 = vpop.permute.xlu0 %272
    %274 = vrot.lane.b32.xlu0 %v265, 127
    %v275 = vpop.permute.xlu0 %274
    %276 = vrot.lane.b32.xlu0 %v266, 127
    %v277 = vpop.permute.xlu0 %276
    %278 = vrot.lane.b32.xlu0 %v267, 127
    %v279 = vpop.permute.xlu0 %278
    %v284 = vadd.f32 %v260, %v273
    %v285 = vadd.f32 %v261, %v275
    %v286 = vadd.f32 %v262, %v277
    %v287 = vadd.f32 %v263, %v279
    %v288 = vmul.f32 %v113, %v258
    %v289 = vmul.f32 %v118, %v258
    %v290 = vmul.f32 %v123, %v258
    %v291 = vmul.f32 %v128, %v258
    %296 = vrot.lane.b32.xlu0 %v288, 126
    %v297 = vpop.permute.xlu0 %296
    %298 = vrot.lane.b32.xlu0 %v289, 126
    %v299 = vpop.permute.xlu0 %298
    %300 = vrot.lane.b32.xlu0 %v290, 126
    %v301 = vpop.permute.xlu0 %300
    %302 = vrot.lane.b32.xlu0 %v291, 126
    %v303 = vpop.permute.xlu0 %302
    %v308 = vadd.f32 %v284, %v297
    %v309 = vadd.f32 %v285, %v299
    %v310 = vadd.f32 %v286, %v301
    %v311 = vadd.f32 %v287, %v303
    %v312 = vmul.f32 %v162, %v258
    %v313 = vmul.f32 %v167, %v258
    %v314 = vmul.f32 %v172, %v258
    %v315 = vmul.f32 %v177, %v258
    %320 = vrot.lane.b32.xlu0 %v312, 125
    %v321 = vpop.permute.xlu0 %320
    %322 = vrot.lane.b32.xlu0 %v313, 125
    %v323 = vpop.permute.xlu0 %322
    %324 = vrot.lane.b32.xlu0 %v314, 125
    %v325 = vpop.permute.xlu0 %324
    %326 = vrot.lane.b32.xlu0 %v315, 125
    %v327 = vpop.permute.xlu0 %326
    %v332 = vadd.f32 %v308, %v321
    %v333 = vadd.f32 %v309, %v323
    %v334 = vadd.f32 %v310, %v325
    %v335 = vadd.f32 %v311, %v327
    %v336 = vmul.f32 %v211, %v258
    %v337 = vmul.f32 %v216, %v258
    %v338 = vmul.f32 %v221, %v258
    %v339 = vmul.f32 %v226, %v258
    %344 = vrot.lane.b32.xlu0 %v336, 124
    %v345 = vpop.permute.xlu0 %344
    %346 = vrot.lane.b32.xlu0 %v337, 124
    %v347 = vpop.permute.xlu0 %346
    %348 = vrot.lane.b32.xlu0 %v338, 124
    %v349 = vpop.permute.xlu0 %348
    %350 = vrot.lane.b32.xlu0 %v339, 124
    %v351 = vpop.permute.xlu0 %350
    %v356 = vadd.f32 %v332, %v345
    %v357 = vadd.f32 %v333, %v347
    %v358 = vadd.f32 %v334, %v349
    %v359 = vadd.f32 %v335, %v351
    %vm360 = vcmask 523264
    %v361 = vsel %vm360, %v248, 0.0
    %362 = vadd.xlane.f32.xlu0 %v361
    %v363 = vpop.xlane.xlu0 %362
    %v364 = vsel %vm360, %v249, 0.0
    %365 = vadd.xlane.f32.xlu0 %v364
    %v366 = vpop.xlane.xlu0 %365
    %v367 = vsel %vm360, %v250, 0.0
    %368 = vadd.xlane.f32.xlu0 %v367
    %v369 = vpop.xlane.xlu0 %368
    %v370 = vsel %vm360, %v251, 0.0
    %371 = vadd.xlane.f32.xlu0 %v370
    %v372 = vpop.xlane.xlu0 %371
    %v373 = vmul.f32 %v248, %v248
    %v374 = vmul.f32 %v249, %v249
    %v375 = vmul.f32 %v250, %v250
    %v376 = vmul.f32 %v251, %v251
    %v377 = vsel %vm360, %v373, 0.0
    %378 = vadd.xlane.f32.xlu0 %v377
    %v379 = vpop.xlane.xlu0 %378
    %v380 = vsel %vm360, %v374, 0.0
    %381 = vadd.xlane.f32.xlu0 %v380
    %v382 = vpop.xlane.xlu0 %381
    %v383 = vsel %vm360, %v375, 0.0
    %384 = vadd.xlane.f32.xlu0 %v383
    %v385 = vpop.xlane.xlu0 %384
    %v386 = vsel %vm360, %v376, 0.0
    %387 = vadd.xlane.f32.xlu0 %v386
    %v388 = vpop.xlane.xlu0 %387
    %v389 = vsel %vm360, %v356, 0.0
    %390 = vadd.xlane.f32.xlu0 %v389
    %v391 = vpop.xlane.xlu0 %390
    %v392 = vsel %vm360, %v357, 0.0
    %393 = vadd.xlane.f32.xlu0 %v392
    %v394 = vpop.xlane.xlu0 %393
    %v395 = vsel %vm360, %v358, 0.0
    %396 = vadd.xlane.f32.xlu0 %v395
    %v397 = vpop.xlane.xlu0 %396
    %v398 = vsel %vm360, %v359, 0.0
    %399 = vadd.xlane.f32.xlu0 %v398
    %v400 = vpop.xlane.xlu0 %399
    %v401 = vadd.f32 %v363, %v391
    %v402 = vadd.f32 %v366, %v394
    %v403 = vadd.f32 %v369, %v397
    %v404 = vadd.f32 %v372, %v400
    %v405 = vmul.f32 %v356, %v356
    %v406 = vmul.f32 %v357, %v357
    %v407 = vmul.f32 %v358, %v358
    %v408 = vmul.f32 %v359, %v359
    %v409 = vsel %vm360, %v405, 0.0
    %410 = vadd.xlane.f32.xlu0 %v409
    %v411 = vpop.xlane.xlu0 %410
    %v412 = vsel %vm360, %v406, 0.0
    %413 = vadd.xlane.f32.xlu0 %v412
    %v414 = vpop.xlane.xlu0 %413
    %v415 = vsel %vm360, %v407, 0.0
    %416 = vadd.xlane.f32.xlu0 %v415
    %v417 = vpop.xlane.xlu0 %416
    %v418 = vsel %vm360, %v408, 0.0
    %419 = vadd.xlane.f32.xlu0 %v418
    %v420 = vpop.xlane.xlu0 %419
    %v421 = vadd.f32 %v379, %v411
    %v422 = vadd.f32 %v382, %v414
    %v423 = vadd.f32 %v385, %v417
    %v424 = vadd.f32 %v388, %v420
    %v425 = vmul.f32 %v401, 0.0078125
    %v426 = vmul.f32 %v402, 0.0078125
    %v427 = vmul.f32 %v403, 0.0078125
    %v428 = vmul.f32 %v404, 0.0078125
    %v429 = vmul.f32 %v421, 0.0078125
    %v430 = vmul.f32 %v422, 0.0078125
    %v431 = vmul.f32 %v423, 0.0078125
    %v432 = vmul.f32 %v424, 0.0078125
    %v433 = vmul.f32 %v425, %v425
    %v434 = vmul.f32 %v426, %v426
    %v435 = vmul.f32 %v427, %v427
    %v436 = vmul.f32 %v428, %v428
    %v437 = vsub.f32 %v429, %v433
    %v438 = vsub.f32 %v430, %v434
    %v439 = vsub.f32 %v431, %v435
    %v440 = vsub.f32 %v432, %v436
    %v441 = vld [vmem:[%s3] sm:$0xff]
    %v442 = vld [vmem:[%s3 + $0x8] sm:$0xff]
    %v443 = vld [vmem:[%s3 + $0x10] sm:$0xff]
    %v444 = vld [vmem:[%s3 + $0x18] sm:$0xff]
    %v445 = vadd.f32 %v437, 1e-05
    %v446 = vadd.f32 %v438, 1e-05
    %v447 = vadd.f32 %v439, 1e-05
    %v448 = vadd.f32 %v440, 1e-05
    %v449 = vrsqrt.pop %v445
    %v450 = vrsqrt.pop %v446
    %v451 = vrsqrt.pop %v447
    %v452 = vrsqrt.pop %v448
    %v453 = vmul.f32 %v441, %v449
    %v454 = vmul.f32 %v442, %v450
    %v455 = vmul.f32 %v443, %v451
    %v456 = vmul.f32 %v444, %v452
    %v457 = vmul.f32 %v425, %v453
    %v458 = vmul.f32 %v426, %v454
    %v459 = vmul.f32 %v427, %v455
    %v460 = vmul.f32 %v428, %v456
    %465 = vrot.lane.b32.xlu0 %v457, 1
    %v466 = vpop.permute.xlu0 %465
    %467 = vrot.lane.b32.xlu0 %v458, 1
    %v468 = vpop.permute.xlu0 %467
    %469 = vrot.lane.b32.xlu0 %v459, 1
    %v470 = vpop.permute.xlu0 %469
    %471 = vrot.lane.b32.xlu0 %v460, 1
    %v472 = vpop.permute.xlu0 %471
    %v477 = vsub.f32 %v441, %v466
    %v478 = vsub.f32 %v442, %v468
    %v479 = vsub.f32 %v443, %v470
    %v480 = vsub.f32 %v444, %v472
    %vm481 = vcmask 556032
    %482 = vst.msk [vmem:[#allocation2] sm:$0xff] %vm481, 0.0
    %483 = vst.msk [vmem:[#allocation2 + $0x8] sm:$0xff] %vm481, 0.0
    %484 = vst.msk [vmem:[#allocation2 + $0x10] sm:$0xff] %vm481, 0.0
    %485 = vst.msk [vmem:[#allocation2 + $0x18] sm:$0xff] %vm481, 0.0
    %487 = vset.pattern.permute.xlu0 0
    %488 = vperm.xlu0 %487, %v453
    %v489 = vpop.permute.xlu0 %488
    %492 = vset.pattern.permute.xlu0 0
    %493 = vperm.xlu0 %492, %v454
    %v494 = vpop.permute.xlu0 %493
    %497 = vset.pattern.permute.xlu0 0
    %498 = vperm.xlu0 %497, %v455
    %v499 = vpop.permute.xlu0 %498
    %502 = vset.pattern.permute.xlu0 0
    %503 = vperm.xlu0 %502, %v456
    %v504 = vpop.permute.xlu0 %503
    %v506 = vmul.f32 %v248, %v489
    %v507 = vmul.f32 %v249, %v494
    %v508 = vmul.f32 %v250, %v499
    %v509 = vmul.f32 %v251, %v504
    %511 = vset.pattern.permute.xlu0 1
    %512 = vperm.xlu0 %511, %v477
    %v513 = vpop.permute.xlu0 %512
    %516 = vset.pattern.permute.xlu0 1
    %517 = vperm.xlu0 %516, %v478
    %v518 = vpop.permute.xlu0 %517
    %521 = vset.pattern.permute.xlu0 1
    %522 = vperm.xlu0 %521, %v479
    %v523 = vpop.permute.xlu0 %522
    %526 = vset.pattern.permute.xlu0 1
    %527 = vperm.xlu0 %526, %v480
    %v528 = vpop.permute.xlu0 %527
    %v530 = vadd.f32 %v506, %v513
    %v531 = vadd.f32 %v507, %v518
    %v532 = vadd.f32 %v508, %v523
    %v533 = vadd.f32 %v509, %v528
    %v534 = vmax.f32 %v530, 0.0
    %v535 = vmax.f32 %v531, 0.0
    %v536 = vmax.f32 %v532, 0.0
    %v537 = vmax.f32 %v533, 0.0
    %542 = vrot.lane.b32.xlu0 %v534, 2
    %v543 = vpop.permute.xlu0 %542
    %544 = vrot.lane.b32.xlu0 %v535, 2
    %v545 = vpop.permute.xlu0 %544
    %546 = vrot.lane.b32.xlu0 %v536, 2
    %v547 = vpop.permute.xlu0 %546
    %548 = vrot.lane.b32.xlu0 %v537, 2
    %v549 = vpop.permute.xlu0 %548
    %vm554 = vcmask 539664
    %555 = vst.msk [vmem:[#allocation2] sm:$0xff] %vm554, %v543
    %556 = vst.msk [vmem:[#allocation2 + $0x8] sm:$0xff] %vm554, %v545
    %557 = vst.msk [vmem:[#allocation2 + $0x10] sm:$0xff] %vm554, %v547
    %558 = vst.msk [vmem:[#allocation2 + $0x18] sm:$0xff] %vm554, %v549
    %v559 = vld [vmem:[%s2] sm:$0x1]
    %v560 = vld [vmem:[#allocation2] sm:$0xff]
    %v561 = vld [vmem:[#allocation2 + $0x8] sm:$0xff]
    %v562 = vld [vmem:[#allocation2 + $0x10] sm:$0xff]
    %v563 = vld [vmem:[#allocation2 + $0x18] sm:$0xff]
    %s564 = scalar_lea.vmem %s2, 1
    %v565 = vld [vmem:[%s564] sm:$0x1]
    %570 = vrot.lane.b32.xlu0 %v560, 127
    %v571 = vpop.permute.xlu0 %570
    %572 = vrot.lane.b32.xlu0 %v561, 127
    %v573 = vpop.permute.xlu0 %572
    %574 = vrot.lane.b32.xlu0 %v562, 127
    %v575 = vpop.permute.xlu0 %574
    %576 = vrot.lane.b32.xlu0 %v563, 127
    %v577 = vpop.permute.xlu0 %576
    %vm582 = vcmask 261120
    %v584 = vsel %vm582, %v565, 0
    %586 = vmatprep.subr.mxu0 0.0
    %587 = vmatpush1.msra.mxu0 %v571
    %588 = vmatprep.subr.mxu0 0.0
    %589 = vmatpush1.msra.mxu0 %v573
    %590 = vmatprep.subr.mxu0 0.0
    %591 = vmatpush1.msra.mxu0 %v575
    %592 = vmatprep.subr.mxu0 0.0
    %593 = vmatpush1.msra.mxu0 %v577
    %594 = vmatprep.subr.mxu0 0.0
    %595 = vmatpush1.msra.mxu0 0.0
    %596 = vmatprep.subr.mxu0 0.0
    %597 = vmatpush1.msra.mxu0 0.0
    %598 = vmatprep.subr.mxu0 0.0
    %599 = vmatpush1.msra.mxu0 0.0
    %600 = vmatprep.subr.mxu0 0.0
    %601 = vmatpush1.msra.mxu0 0.0
    %602 = vmatprep.subr.mxu0 0.0
    %603 = vmatpush1.msra.mxu0 0.0
    %604 = vmatprep.subr.mxu0 0.0
    %605 = vmatpush1.msra.mxu0 0.0
    %606 = vmatprep.subr.mxu0 0.0
    %607 = vmatpush1.msra.mxu0 0.0
    %608 = vmatprep.subr.mxu0 0.0
    %609 = vmatpush1.msra.mxu0 0.0
    %610 = vmatprep.subr.mxu0 0.0
    %611 = vmatpush1.msra.mxu0 0.0
    %612 = vmatprep.subr.mxu0 0.0
    %613 = vmatpush1.msra.mxu0 0.0
    %614 = vmatprep.subr.mxu0 0.0
    %615 = vmatpush1.msra.mxu0 0.0
    %616 = vmatprep.subr.mxu0 0.0
    %617 = vmatpush1.msra.mxu0 0.0
    %618 = vmatprep.subr.mxu0 0.0
    %619 = vmatpush1.msra.mxu0 0.0
    %620 = vmatprep.subr.mxu0 0.0
    %621 = vmatpush1.msra.mxu0 0.0
    %622 = vmatprep.subr.mxu0 0.0
    %623 = vmatpush1.msra.mxu0 0.0
    %624 = vmatprep.subr.mxu0 0.0
    %625 = vmatpush1.msra.mxu0 0.0
    %626 = vmatprep.subr.mxu0 0.0
    %627 = vmatpush1.msra.mxu0 0.0
    %628 = vmatprep.subr.mxu0 0.0
    %629 = vmatpush1.msra.mxu0 0.0
    %630 = vmatprep.subr.mxu0 0.0
    %631 = vmatpush1.msra.mxu0 0.0
    %632 = vmatprep.subr.mxu0 0.0
    %633 = vmatpush1.msra.mxu0 0.0
    %634 = vmatprep.subr.mxu0 0.0
    %635 = vmatpush1.msra.mxu0 0.0
    %636 = vmatprep.subr.mxu0 0.0
    %637 = vmatpush1.msra.mxu0 0.0
    %638 = vmatprep.subr.mxu0 0.0
    %639 = vmatpush1.msra.mxu0 0.0
    %640 = vmatprep.subr.mxu0 0.0
    %641 = vmatpush1.msra.mxu0 0.0
    %642 = vmatprep.subr.mxu0 0.0
    %643 = vmatpush1.msra.mxu0 0.0
    %644 = vmatprep.subr.mxu0 0.0
    %645 = vmatpush1.msra.mxu0 0.0
    %646 = vmatprep.subr.mxu0 0.0
    %647 = vmatpush1.msra.mxu0 0.0
    %648 = vmatprep.subr.mxu0 0.0
    %649 = vmatpush1.msra.mxu0 0.0
    %650 = vmatprep.mubr.f32.mxu0 0.0
    %651 = vmatmul.mubr.f32.gmra.mrb[0].mxu0 %v584
    %v652 = vpop.f32.mrb[0].mxu0
    %v653 = vadd.f32 0.0, %v652
    %v654 = vpop.f32.mrb[0].mxu0
    %655 = vdwg.mxu0
    %v657 = vsel %vm582, %v559, 0
    %659 = vmatprep.subr.mxu0 0.0
    %660 = vmatpush1.msra.mxu0 %v560
    %661 = vmatprep.subr.mxu0 0.0
    %662 = vmatpush1.msra.mxu0 %v561
    %663 = vmatprep.subr.mxu0 0.0
    %664 = vmatpush1.msra.mxu0 %v562
    %665 = vmatprep.subr.mxu0 0.0
    %666 = vmatpush1.msra.mxu0 %v563
    %667 = vmatprep.subr.mxu0 0.0
    %668 = vmatpush1.msra.mxu0 0.0
    %669 = vmatprep.subr.mxu0 0.0
    %670 = vmatpush1.msra.mxu0 0.0
    %671 = vmatprep.subr.mxu0 0.0
    %672 = vmatpush1.msra.mxu0 0.0
    %673 = vmatprep.subr.mxu0 0.0
    %674 = vmatpush1.msra.mxu0 0.0
    %675 = vmatprep.subr.mxu0 0.0
    %676 = vmatpush1.msra.mxu0 0.0
    %677 = vmatprep.subr.mxu0 0.0
    %678 = vmatpush1.msra.mxu0 0.0
    %679 = vmatprep.subr.mxu0 0.0
    %680 = vmatpush1.msra.mxu0 0.0
    %681 = vmatprep.subr.mxu0 0.0
    %682 = vmatpush1.msra.mxu0 0.0
    %683 = vmatprep.subr.mxu0 0.0
    %684 = vmatpush1.msra.mxu0 0.0
    %685 = vmatprep.subr.mxu0 0.0
    %686 = vmatpush1.msra.mxu0 0.0
    %687 = vmatprep.subr.mxu0 0.0
    %688 = vmatpush1.msra.mxu0 0.0
    %689 = vmatprep.subr.mxu0 0.0
    %690 = vmatpush1.msra.mxu0 0.0
    %691 = vmatprep.subr.mxu0 0.0
    %692 = vmatpush1.msra.mxu0 0.0
    %693 = vmatprep.subr.mxu0 0.0
    %694 = vmatpush1.msra.mxu0 0.0
    %695 = vmatprep.subr.mxu0 0.0
    %696 = vmatpush1.msra.mxu0 0.0
    %697 = vmatprep.subr.mxu0 0.0
    %698 = vmatpush1.msra.mxu0 0.0
    %699 = vmatprep.subr.mxu0 0.0
    %700 = vmatpush1.msra.mxu0 0.0
    %701 = vmatprep.subr.mxu0 0.0
    %702 = vmatpush1.msra.mxu0 0.0
    %703 = vmatprep.subr.mxu0 0.0
    %704 = vmatpush1.msra.mxu0 0.0
    %705 = vmatprep.subr.mxu0 0.0
    %706 = vmatpush1.msra.mxu0 0.0
    %707 = vmatprep.subr.mxu0 0.0
    %708 = vmatpush1.msra.mxu0 0.0
    %709 = vmatprep.subr.mxu0 0.0
    %710 = vmatpush1.msra.mxu0 0.0
    %711 = vmatprep.subr.mxu0 0.0
    %712 = vmatpush1.msra.mxu0 0.0
    %713 = vmatprep.subr.mxu0 0.0
    %714 = vmatpush1.msra.mxu0 0.0
    %715 = vmatprep.subr.mxu0 0.0
    %716 = vmatpush1.msra.mxu0 0.0
    %717 = vmatprep.subr.mxu0 0.0
    %718 = vmatpush1.msra.mxu0 0.0
    %719 = vmatprep.subr.mxu0 0.0
    %720 = vmatpush1.msra.mxu0 0.0
    %721 = vmatprep.subr.mxu0 0.0
    %722 = vmatpush1.msra.mxu0 0.0
    %723 = vmatprep.mubr.f32.mxu0 0.0
    %724 = vmatmul.mubr.f32.gmra.mrb[0].mxu0 %v657
    %v725 = vpop.f32.mrb[0].mxu0
    %v726 = vadd.f32 %v653, %v725
    %v727 = vpop.f32.mrb[0].mxu0
    %728 = vdwg.mxu0
    %s729 = scalar_lea.vmem %s2, 2
    %v730 = vld [vmem:[%s729] sm:$0x1]
    %731 = vrot.lane.b32.xlu0 %v560, 126
    %v732 = vpop.permute.xlu0 %731
    %733 = vrot.lane.b32.xlu0 %v561, 126
    %v734 = vpop.permute.xlu0 %733
    %735 = vrot.lane.b32.xlu0 %v562, 126
    %v736 = vpop.permute.xlu0 %735
    %737 = vrot.lane.b32.xlu0 %v563, 126
    %v738 = vpop.permute.xlu0 %737
    %v744 = vsel %vm582, %v730, 0
    %746 = vmatprep.subr.mxu0 0.0
    %747 = vmatpush1.msra.mxu0 %v732
    %748 = vmatprep.subr.mxu0 0.0
    %749 = vmatpush1.msra.mxu0 %v734
    %750 = vmatprep.subr.mxu0 0.0
    %751 = vmatpush1.msra.mxu0 %v736
    %752 = vmatprep.subr.mxu0 0.0
    %753 = vmatpush1.msra.mxu0 %v738
    %754 = vmatprep.subr.mxu0 0.0
    %755 = vmatpush1.msra.mxu0 0.0
    %756 = vmatprep.subr.mxu0 0.0
    %757 = vmatpush1.msra.mxu0 0.0
    %758 = vmatprep.subr.mxu0 0.0
    %759 = vmatpush1.msra.mxu0 0.0
    %760 = vmatprep.subr.mxu0 0.0
    %761 = vmatpush1.msra.mxu0 0.0
    %762 = vmatprep.subr.mxu0 0.0
    %763 = vmatpush1.msra.mxu0 0.0
    %764 = vmatprep.subr.mxu0 0.0
    %765 = vmatpush1.msra.mxu0 0.0
    %766 = vmatprep.subr.mxu0 0.0
    %767 = vmatpush1.msra.mxu0 0.0
    %768 = vmatprep.subr.mxu0 0.0
    %769 = vmatpush1.msra.mxu0 0.0
    %770 = vmatprep.subr.mxu0 0.0
    %771 = vmatpush1.msra.mxu0 0.0
    %772 = vmatprep.subr.mxu0 0.0
    %773 = vmatpush1.msra.mxu0 0.0
    %774 = vmatprep.subr.mxu0 0.0
    %775 = vmatpush1.msra.mxu0 0.0
    %776 = vmatprep.subr.mxu0 0.0
    %777 = vmatpush1.msra.mxu0 0.0
    %778 = vmatprep.subr.mxu0 0.0
    %779 = vmatpush1.msra.mxu0 0.0
    %780 = vmatprep.subr.mxu0 0.0
    %781 = vmatpush1.msra.mxu0 0.0
    %782 = vmatprep.subr.mxu0 0.0
    %783 = vmatpush1.msra.mxu0 0.0
    %784 = vmatprep.subr.mxu0 0.0
    %785 = vmatpush1.msra.mxu0 0.0
    %786 = vmatprep.subr.mxu0 0.0
    %787 = vmatpush1.msra.mxu0 0.0
    %788 = vmatprep.subr.mxu0 0.0
    %789 = vmatpush1.msra.mxu0 0.0
    %790 = vmatprep.subr.mxu0 0.0
    %791 = vmatpush1.msra.mxu0 0.0
    %792 = vmatprep.subr.mxu0 0.0
    %793 = vmatpush1.msra.mxu0 0.0
    %794 = vmatprep.subr.mxu0 0.0
    %795 = vmatpush1.msra.mxu0 0.0
    %796 = vmatprep.subr.mxu0 0.0
    %797 = vmatpush1.msra.mxu0 0.0
    %798 = vmatprep.subr.mxu0 0.0
    %799 = vmatpush1.msra.mxu0 0.0
    %800 = vmatprep.subr.mxu0 0.0
    %801 = vmatpush1.msra.mxu0 0.0
    %802 = vmatprep.subr.mxu0 0.0
    %803 = vmatpush1.msra.mxu0 0.0
    %804 = vmatprep.subr.mxu0 0.0
    %805 = vmatpush1.msra.mxu0 0.0
    %806 = vmatprep.subr.mxu0 0.0
    %807 = vmatpush1.msra.mxu0 0.0
    %808 = vmatprep.subr.mxu0 0.0
    %809 = vmatpush1.msra.mxu0 0.0
    %810 = vmatprep.mubr.f32.mxu0 0.0
    %811 = vmatmul.mubr.f32.gmra.mrb[0].mxu0 %v744
    %v812 = vpop.f32.mrb[0].mxu0
    %v813 = vadd.f32 0.0, %v812
    %v814 = vpop.f32.mrb[0].mxu0
    %815 = vdwg.mxu0
    %v816 = vadd.f32 %v726, %v813
    %s817 = scalar_lea.vmem %s2, 3
    %v818 = vld [vmem:[%s817] sm:$0x1]
    %819 = vrot.lane.b32.xlu0 %v560, 125
    %v820 = vpop.permute.xlu0 %819
    %821 = vrot.lane.b32.xlu0 %v561, 125
    %v822 = vpop.permute.xlu0 %821
    %823 = vrot.lane.b32.xlu0 %v562, 125
    %v824 = vpop.permute.xlu0 %823
    %825 = vrot.lane.b32.xlu0 %v563, 125
    %v826 = vpop.permute.xlu0 %825
    %v832 = vsel %vm582, %v818, 0
    %834 = vmatprep.subr.mxu0 0.0
    %835 = vmatpush1.msra.mxu0 %v820
    %836 = vmatprep.subr.mxu0 0.0
    %837 = vmatpush1.msra.mxu0 %v822
    %838 = vmatprep.subr.mxu0 0.0
    %839 = vmatpush1.msra.mxu0 %v824
    %840 = vmatprep.subr.mxu0 0.0
    %841 = vmatpush1.msra.mxu0 %v826
    %842 = vmatprep.subr.mxu0 0.0
    %843 = vmatpush1.msra.mxu0 0.0
    %844 = vmatprep.subr.mxu0 0.0
    %845 = vmatpush1.msra.mxu0 0.0
    %846 = vmatprep.subr.mxu0 0.0
    %847 = vmatpush1.msra.mxu0 0.0
    %848 = vmatprep.subr.mxu0 0.0
    %849 = vmatpush1.msra.mxu0 0.0
    %850 = vmatprep.subr.mxu0 0.0
    %851 = vmatpush1.msra.mxu0 0.0
    %852 = vmatprep.subr.mxu0 0.0
    %853 = vmatpush1.msra.mxu0 0.0
    %854 = vmatprep.subr.mxu0 0.0
    %855 = vmatpush1.msra.mxu0 0.0
    %856 = vmatprep.subr.mxu0 0.0
    %857 = vmatpush1.msra.mxu0 0.0
    %858 = vmatprep.subr.mxu0 0.0
    %859 = vmatpush1.msra.mxu0 0.0
    %860 = vmatprep.subr.mxu0 0.0
    %861 = vmatpush1.msra.mxu0 0.0
    %862 = vmatprep.subr.mxu0 0.0
    %863 = vmatpush1.msra.mxu0 0.0
    %864 = vmatprep.subr.mxu0 0.0
    %865 = vmatpush1.msra.mxu0 0.0
    %866 = vmatprep.subr.mxu0 0.0
    %867 = vmatpush1.msra.mxu0 0.0
    %868 = vmatprep.subr.mxu0 0.0
    %869 = vmatpush1.msra.mxu0 0.0
    %870 = vmatprep.subr.mxu0 0.0
    %871 = vmatpush1.msra.mxu0 0.0
    %872 = vmatprep.subr.mxu0 0.0
    %873 = vmatpush1.msra.mxu0 0.0
    %874 = vmatprep.subr.mxu0 0.0
    %875 = vmatpush1.msra.mxu0 0.0
    %876 = vmatprep.subr.mxu0 0.0
    %877 = vmatpush1.msra.mxu0 0.0
    %878 = vmatprep.subr.mxu0 0.0
    %879 = vmatpush1.msra.mxu0 0.0
    %880 = vmatprep.subr.mxu0 0.0
    %881 = vmatpush1.msra.mxu0 0.0
    %882 = vmatprep.subr.mxu0 0.0
    %883 = vmatpush1.msra.mxu0 0.0
    %884 = vmatprep.subr.mxu0 0.0
    %885 = vmatpush1.msra.mxu0 0.0
    %886 = vmatprep.subr.mxu0 0.0
    %887 = vmatpush1.msra.mxu0 0.0
    %888 = vmatprep.subr.mxu0 0.0
    %889 = vmatpush1.msra.mxu0 0.0
    %890 = vmatprep.subr.mxu0 0.0
    %891 = vmatpush1.msra.mxu0 0.0
    %892 = vmatprep.subr.mxu0 0.0
    %893 = vmatpush1.msra.mxu0 0.0
    %894 = vmatprep.subr.mxu0 0.0
    %895 = vmatpush1.msra.mxu0 0.0
    %896 = vmatprep.subr.mxu0 0.0
    %897 = vmatpush1.msra.mxu0 0.0
    %898 = vmatprep.mubr.f32.mxu0 0.0
    %899 = vmatmul.mubr.f32.gmra.mrb[0].mxu0 %v832
    %v900 = vpop.f32.mrb[0].mxu0
    %v901 = vadd.f32 0.0, %v900
    %v902 = vpop.f32.mrb[0].mxu0
    %903 = vdwg.mxu0
    %v904 = vadd.f32 %v816, %v901
    %s905 = scalar_lea.vmem %s2, 4
    %v906 = vld [vmem:[%s905] sm:$0x1]
    %907 = vrot.lane.b32.xlu0 %v560, 124
    %v908 = vpop.permute.xlu0 %907
    %909 = vrot.lane.b32.xlu0 %v561, 124
    %v910 = vpop.permute.xlu0 %909
    %911 = vrot.lane.b32.xlu0 %v562, 124
    %v912 = vpop.permute.xlu0 %911
    %913 = vrot.lane.b32.xlu0 %v563, 124
    %v914 = vpop.permute.xlu0 %913
    %v920 = vsel %vm582, %v906, 0
    %922 = vmatprep.subr.mxu0 0.0
    %923 = vmatpush1.msra.mxu0 %v908
    %924 = vmatprep.subr.mxu0 0.0
    %925 = vmatpush1.msra.mxu0 %v910
    %926 = vmatprep.subr.mxu0 0.0
    %927 = vmatpush1.msra.mxu0 %v912
    %928 = vmatprep.subr.mxu0 0.0
    %929 = vmatpush1.msra.mxu0 %v914
    %930 = vmatprep.subr.mxu0 0.0
    %931 = vmatpush1.msra.mxu0 0.0
    %932 = vmatprep.subr.mxu0 0.0
    %933 = vmatpush1.msra.mxu0 0.0
    %934 = vmatprep.subr.mxu0 0.0
    %935 = vmatpush1.msra.mxu0 0.0
    %936 = vmatprep.subr.mxu0 0.0
    %937 = vmatpush1.msra.mxu0 0.0
    %938 = vmatprep.subr.mxu0 0.0
    %939 = vmatpush1.msra.mxu0 0.0
    %940 = vmatprep.subr.mxu0 0.0
    %941 = vmatpush1.msra.mxu0 0.0
    %942 = vmatprep.subr.mxu0 0.0
    %943 = vmatpush1.msra.mxu0 0.0
    %944 = vmatprep.subr.mxu0 0.0
    %945 = vmatpush1.msra.mxu0 0.0
    %946 = vmatprep.subr.mxu0 0.0
    %947 = vmatpush1.msra.mxu0 0.0
    %948 = vmatprep.subr.mxu0 0.0
    %949 = vmatpush1.msra.mxu0 0.0
    %950 = vmatprep.subr.mxu0 0.0
    %951 = vmatpush1.msra.mxu0 0.0
    %952 = vmatprep.subr.mxu0 0.0
    %953 = vmatpush1.msra.mxu0 0.0
    %954 = vmatprep.subr.mxu0 0.0
    %955 = vmatpush1.msra.mxu0 0.0
    %956 = vmatprep.subr.mxu0 0.0
    %957 = vmatpush1.msra.mxu0 0.0
    %958 = vmatprep.subr.mxu0 0.0
    %959 = vmatpush1.msra.mxu0 0.0
    %960 = vmatprep.subr.mxu0 0.0
    %961 = vmatpush1.msra.mxu0 0.0
    %962 = vmatprep.subr.mxu0 0.0
    %963 = vmatpush1.msra.mxu0 0.0
    %964 = vmatprep.subr.mxu0 0.0
    %965 = vmatpush1.msra.mxu0 0.0
    %966 = vmatprep.subr.mxu0 0.0
    %967 = vmatpush1.msra.mxu0 0.0
    %968 = vmatprep.subr.mxu0 0.0
    %969 = vmatpush1.msra.mxu0 0.0
    %970 = vmatprep.subr.mxu0 0.0
    %971 = vmatpush1.msra.mxu0 0.0
    %972 = vmatprep.subr.mxu0 0.0
    %973 = vmatpush1.msra.mxu0 0.0
    %974 = vmatprep.subr.mxu0 0.0
    %975 = vmatpush1.msra.mxu0 0.0
    %976 = vmatprep.subr.mxu0 0.0
    %977 = vmatpush1.msra.mxu0 0.0
    %978 = vmatprep.subr.mxu0 0.0
    %979 = vmatpush1.msra.mxu0 0.0
    %980 = vmatprep.subr.mxu0 0.0
    %981 = vmatpush1.msra.mxu0 0.0
    %982 = vmatprep.subr.mxu0 0.0
    %983 = vmatpush1.msra.mxu0 0.0
    %984 = vmatprep.subr.mxu0 0.0
    %985 = vmatpush1.msra.mxu0 0.0
    %986 = vmatprep.mubr.f32.mxu0 0.0
    %987 = vmatmul.mubr.f32.gmra.mrb[0].mxu0 %v920
    %v988 = vpop.f32.mrb[0].mxu0
    %v989 = vadd.f32 0.0, %v988
    %v990 = vpop.f32.mrb[0].mxu0
    %991 = vdwg.mxu0
    %v992 = vadd.f32 %v904, %v989
    %v993 = vmul.f32 %v356, %v489
    %v994 = vmul.f32 %v357, %v494
    %v995 = vmul.f32 %v358, %v499
    %v996 = vmul.f32 %v359, %v504
    %v997 = vadd.f32 %v993, %v513
    %v998 = vadd.f32 %v994, %v518
    %v999 = vadd.f32 %v995, %v523
    %v1000 = vadd.f32 %v996, %v528
    %v1001 = vmax.f32 %v997, 0.0
    %v1002 = vmax.f32 %v998, 0.0
    %v1003 = vmax.f32 %v999, 0.0
    %v1004 = vmax.f32 %v1000, 0.0
    %1009 = vrot.lane.b32.xlu0 %v1001, 2
    %v1010 = vpop.permute.xlu0 %1009
    %1011 = vrot.lane.b32.xlu0 %v1002, 2
    %v1012 = vpop.permute.xlu0 %1011
    %1013 = vrot.lane.b32.xlu0 %v1003, 2
    %v1014 = vpop.permute.xlu0 %1013
    %1015 = vrot.lane.b32.xlu0 %v1004, 2
    %v1016 = vpop.permute.xlu0 %1015
    %1021 = vst.msk [vmem:[#allocation2] sm:$0xff] %vm554, %v1010
    %1022 = vst.msk [vmem:[#allocation2 + $0x8] sm:$0xff] %vm554, %v1012
    %1023 = vst.msk [vmem:[#allocation2 + $0x10] sm:$0xff] %vm554, %v1014
    %1024 = vst.msk [vmem:[#allocation2 + $0x18] sm:$0xff] %vm554, %v1016
    %v1025 = vld [vmem:[%s2] sm:$0x1]
    %v1026 = vld [vmem:[#allocation2] sm:$0xff]
    %v1027 = vld [vmem:[#allocation2 + $0x8] sm:$0xff]
    %v1028 = vld [vmem:[#allocation2 + $0x10] sm:$0xff]
    %v1029 = vld [vmem:[#allocation2 + $0x18] sm:$0xff]
    %v1030 = vld [vmem:[%s564] sm:$0x1]
    %1035 = vrot.lane.b32.xlu0 %v1026, 127
    %v1036 = vpop.permute.xlu0 %1035
    %1037 = vrot.lane.b32.xlu0 %v1027, 127
    %v1038 = vpop.permute.xlu0 %1037
    %1039 = vrot.lane.b32.xlu0 %v1028, 127
    %v1040 = vpop.permute.xlu0 %1039
    %1041 = vrot.lane.b32.xlu0 %v1029, 127
    %v1042 = vpop.permute.xlu0 %1041
    %v1048 = vsel %vm582, %v1030, 0
    %1050 = vmatprep.subr.mxu0 0.0
    %1051 = vmatpush1.msra.mxu0 %v1036
    %1052 = vmatprep.subr.mxu0 0.0
    %1053 = vmatpush1.msra.mxu0 %v1038
    %1054 = vmatprep.subr.mxu0 0.0
    %1055 = vmatpush1.msra.mxu0 %v1040
    %1056 = vmatprep.subr.mxu0 0.0
    %1057 = vmatpush1.msra.mxu0 %v1042
    %1058 = vmatprep.subr.mxu0 0.0
    %1059 = vmatpush1.msra.mxu0 0.0
    %1060 = vmatprep.subr.mxu0 0.0
    %1061 = vmatpush1.msra.mxu0 0.0
    %1062 = vmatprep.subr.mxu0 0.0
    %1063 = vmatpush1.msra.mxu0 0.0
    %1064 = vmatprep.subr.mxu0 0.0
    %1065 = vmatpush1.msra.mxu0 0.0
    %1066 = vmatprep.subr.mxu0 0.0
    %1067 = vmatpush1.msra.mxu0 0.0
    %1068 = vmatprep.subr.mxu0 0.0
    %1069 = vmatpush1.msra.mxu0 0.0
    %1070 = vmatprep.subr.mxu0 0.0
    %1071 = vmatpush1.msra.mxu0 0.0
    %1072 = vmatprep.subr.mxu0 0.0
    %1073 = vmatpush1.msra.mxu0 0.0
    %1074 = vmatprep.subr.mxu0 0.0
    %1075 = vmatpush1.msra.mxu0 0.0
    %1076 = vmatprep.subr.mxu0 0.0
    %1077 = vmatpush1.msra.mxu0 0.0
    %1078 = vmatprep.subr.mxu0 0.0
    %1079 = vmatpush1.msra.mxu0 0.0
    %1080 = vmatprep.subr.mxu0 0.0
    %1081 = vmatpush1.msra.mxu0 0.0
    %1082 = vmatprep.subr.mxu0 0.0
    %1083 = vmatpush1.msra.mxu0 0.0
    %1084 = vmatprep.subr.mxu0 0.0
    %1085 = vmatpush1.msra.mxu0 0.0
    %1086 = vmatprep.subr.mxu0 0.0
    %1087 = vmatpush1.msra.mxu0 0.0
    %1088 = vmatprep.subr.mxu0 0.0
    %1089 = vmatpush1.msra.mxu0 0.0
    %1090 = vmatprep.subr.mxu0 0.0
    %1091 = vmatpush1.msra.mxu0 0.0
    %1092 = vmatprep.subr.mxu0 0.0
    %1093 = vmatpush1.msra.mxu0 0.0
    %1094 = vmatprep.subr.mxu0 0.0
    %1095 = vmatpush1.msra.mxu0 0.0
    %1096 = vmatprep.subr.mxu0 0.0
    %1097 = vmatpush1.msra.mxu0 0.0
    %1098 = vmatprep.subr.mxu0 0.0
    %1099 = vmatpush1.msra.mxu0 0.0
    %1100 = vmatprep.subr.mxu0 0.0
    %1101 = vmatpush1.msra.mxu0 0.0
    %1102 = vmatprep.subr.mxu0 0.0
    %1103 = vmatpush1.msra.mxu0 0.0
    %1104 = vmatprep.subr.mxu0 0.0
    %1105 = vmatpush1.msra.mxu0 0.0
    %1106 = vmatprep.subr.mxu0 0.0
    %1107 = vmatpush1.msra.mxu0 0.0
    %1108 = vmatprep.subr.mxu0 0.0
    %1109 = vmatpush1.msra.mxu0 0.0
    %1110 = vmatprep.subr.mxu0 0.0
    %1111 = vmatpush1.msra.mxu0 0.0
    %1112 = vmatprep.subr.mxu0 0.0
    %1113 = vmatpush1.msra.mxu0 0.0
    %1114 = vmatprep.mubr.f32.mxu0 0.0
    %1115 = vmatmul.mubr.f32.gmra.mrb[0].mxu0 %v1048
    %v1116 = vpop.f32.mrb[0].mxu0
    %v1117 = vadd.f32 0.0, %v1116
    %v1118 = vpop.f32.mrb[0].mxu0
    %1119 = vdwg.mxu0
    %v1121 = vsel %vm582, %v1025, 0
    %1123 = vmatprep.subr.mxu0 0.0
    %1124 = vmatpush1.msra.mxu0 %v1026
    %1125 = vmatprep.subr.mxu0 0.0
    %1126 = vmatpush1.msra.mxu0 %v1027
    %1127 = vmatprep.subr.mxu0 0.0
    %1128 = vmatpush1.msra.mxu0 %v1028
    %1129 = vmatprep.subr.mxu0 0.0
    %1130 = vmatpush1.msra.mxu0 %v1029
    %1131 = vmatprep.subr.mxu0 0.0
    %1132 = vmatpush1.msra.mxu0 0.0
    %1133 = vmatprep.subr.mxu0 0.0
    %1134 = vmatpush1.msra.mxu0 0.0
    %1135 = vmatprep.subr.mxu0 0.0
    %1136 = vmatpush1.msra.mxu0 0.0
    %1137 = vmatprep.subr.mxu0 0.0
    %1138 = vmatpush1.msra.mxu0 0.0
    %1139 = vmatprep.subr.mxu0 0.0
    %1140 = vmatpush1.msra.mxu0 0.0
    %1141 = vmatprep.subr.mxu0 0.0
    %1142 = vmatpush1.msra.mxu0 0.0
    %1143 = vmatprep.subr.mxu0 0.0
    %1144 = vmatpush1.msra.mxu0 0.0
    %1145 = vmatprep.subr.mxu0 0.0
    %1146 = vmatpush1.msra.mxu0 0.0
    %1147 = vmatprep.subr.mxu0 0.0
    %1148 = vmatpush1.msra.mxu0 0.0
    %1149 = vmatprep.subr.mxu0 0.0
    %1150 = vmatpush1.msra.mxu0 0.0
    %1151 = vmatprep.subr.mxu0 0.0
    %1152 = vmatpush1.msra.mxu0 0.0
    %1153 = vmatprep.subr.mxu0 0.0
    %1154 = vmatpush1.msra.mxu0 0.0
    %1155 = vmatprep.subr.mxu0 0.0
    %1156 = vmatpush1.msra.mxu0 0.0
    %1157 = vmatprep.subr.mxu0 0.0
    %1158 = vmatpush1.msra.mxu0 0.0
    %1159 = vmatprep.subr.mxu0 0.0
    %1160 = vmatpush1.msra.mxu0 0.0
    %1161 = vmatprep.subr.mxu0 0.0
    %1162 = vmatpush1.msra.mxu0 0.0
    %1163 = vmatprep.subr.mxu0 0.0
    %1164 = vmatpush1.msra.mxu0 0.0
    %1165 = vmatprep.subr.mxu0 0.0
    %1166 = vmatpush1.msra.mxu0 0.0
    %1167 = vmatprep.subr.mxu0 0.0
    %1168 = vmatpush1.msra.mxu0 0.0
    %1169 = vmatprep.subr.mxu0 0.0
    %1170 = vmatpush1.msra.mxu0 0.0
    %1171 = vmatprep.subr.mxu0 0.0
    %1172 = vmatpush1.msra.mxu0 0.0
    %1173 = vmatprep.subr.mxu0 0.0
    %1174 = vmatpush1.msra.mxu0 0.0
    %1175 = vmatprep.subr.mxu0 0.0
    %1176 = vmatpush1.msra.mxu0 0.0
    %1177 = vmatprep.subr.mxu0 0.0
    %1178 = vmatpush1.msra.mxu0 0.0
    %1179 = vmatprep.subr.mxu0 0.0
    %1180 = vmatpush1.msra.mxu0 0.0
    %1181 = vmatprep.subr.mxu0 0.0
    %1182 = vmatpush1.msra.mxu0 0.0
    %1183 = vmatprep.subr.mxu0 0.0
    %1184 = vmatpush1.msra.mxu0 0.0
    %1185 = vmatprep.subr.mxu0 0.0
    %1186 = vmatpush1.msra.mxu0 0.0
    %1187 = vmatprep.mubr.f32.mxu0 0.0
    %1188 = vmatmul.mubr.f32.gmra.mrb[0].mxu0 %v1121
    %v1189 = vpop.f32.mrb[0].mxu0
    %v1190 = vadd.f32 %v1117, %v1189
    %v1191 = vpop.f32.mrb[0].mxu0
    %1192 = vdwg.mxu0
    %v1193 = vld [vmem:[%s729] sm:$0x1]
    %1194 = vrot.lane.b32.xlu0 %v1026, 126
    %v1195 = vpop.permute.xlu0 %1194
    %1196 = vrot.lane.b32.xlu0 %v1027, 126
    %v1197 = vpop.permute.xlu0 %1196
    %1198 = vrot.lane.b32.xlu0 %v1028, 126
    %v1199 = vpop.permute.xlu0 %1198
    %1200 = vrot.lane.b32.xlu0 %v1029, 126
    %v1201 = vpop.permute.xlu0 %1200
    %v1207 = vsel %vm582, %v1193, 0
    %1209 = vmatprep.subr.mxu0 0.0
    %1210 = vmatpush1.msra.mxu0 %v1195
    %1211 = vmatprep.subr.mxu0 0.0
    %1212 = vmatpush1.msra.mxu0 %v1197
    %1213 = vmatprep.subr.mxu0 0.0
    %1214 = vmatpush1.msra.mxu0 %v1199
    %1215 = vmatprep.subr.mxu0 0.0
    %1216 = vmatpush1.msra.mxu0 %v1201
    %1217 = vmatprep.subr.mxu0 0.0
    %1218 = vmatpush1.msra.mxu0 0.0
    %1219 = vmatprep.subr.mxu0 0.0
    %1220 = vmatpush1.msra.mxu0 0.0
    %1221 = vmatprep.subr.mxu0 0.0
    %1222 = vmatpush1.msra.mxu0 0.0
    %1223 = vmatprep.subr.mxu0 0.0
    %1224 = vmatpush1.msra.mxu0 0.0
    %1225 = vmatprep.subr.mxu0 0.0
    %1226 = vmatpush1.msra.mxu0 0.0
    %1227 = vmatprep.subr.mxu0 0.0
    %1228 = vmatpush1.msra.mxu0 0.0
    %1229 = vmatprep.subr.mxu0 0.0
    %1230 = vmatpush1.msra.mxu0 0.0
    %1231 = vmatprep.subr.mxu0 0.0
    %1232 = vmatpush1.msra.mxu0 0.0
    %1233 = vmatprep.subr.mxu0 0.0
    %1234 = vmatpush1.msra.mxu0 0.0
    %1235 = vmatprep.subr.mxu0 0.0
    %1236 = vmatpush1.msra.mxu0 0.0
    %1237 = vmatprep.subr.mxu0 0.0
    %1238 = vmatpush1.msra.mxu0 0.0
    %1239 = vmatprep.subr.mxu0 0.0
    %1240 = vmatpush1.msra.mxu0 0.0
    %1241 = vmatprep.subr.mxu0 0.0
    %1242 = vmatpush1.msra.mxu0 0.0
    %1243 = vmatprep.subr.mxu0 0.0
    %1244 = vmatpush1.msra.mxu0 0.0
    %1245 = vmatprep.subr.mxu0 0.0
    %1246 = vmatpush1.msra.mxu0 0.0
    %1247 = vmatprep.subr.mxu0 0.0
    %1248 = vmatpush1.msra.mxu0 0.0
    %1249 = vmatprep.subr.mxu0 0.0
    %1250 = vmatpush1.msra.mxu0 0.0
    %1251 = vmatprep.subr.mxu0 0.0
    %1252 = vmatpush1.msra.mxu0 0.0
    %1253 = vmatprep.subr.mxu0 0.0
    %1254 = vmatpush1.msra.mxu0 0.0
    %1255 = vmatprep.subr.mxu0 0.0
    %1256 = vmatpush1.msra.mxu0 0.0
    %1257 = vmatprep.subr.mxu0 0.0
    %1258 = vmatpush1.msra.mxu0 0.0
    %1259 = vmatprep.subr.mxu0 0.0
    %1260 = vmatpush1.msra.mxu0 0.0
    %1261 = vmatprep.subr.mxu0 0.0
    %1262 = vmatpush1.msra.mxu0 0.0
    %1263 = vmatprep.subr.mxu0 0.0
    %1264 = vmatpush1.msra.mxu0 0.0
    %1265 = vmatprep.subr.mxu0 0.0
    %1266 = vmatpush1.msra.mxu0 0.0
    %1267 = vmatprep.subr.mxu0 0.0
    %1268 = vmatpush1.msra.mxu0 0.0
    %1269 = vmatprep.subr.mxu0 0.0
    %1270 = vmatpush1.msra.mxu0 0.0
    %1271 = vmatprep.subr.mxu0 0.0
    %1272 = vmatpush1.msra.mxu0 0.0
    %1273 = vmatprep.mubr.f32.mxu0 0.0
    %1274 = vmatmul.mubr.f32.gmra.mrb[0].mxu0 %v1207
    %v1275 = vpop.f32.mrb[0].mxu0
    %v1276 = vadd.f32 0.0, %v1275
    %v1277 = vpop.f32.mrb[0].mxu0
    %1278 = vdwg.mxu0
    %v1279 = vadd.f32 %v1190, %v1276
    %v1280 = vld [vmem:[%s817] sm:$0x1]
    %1281 = vrot.lane.b32.xlu0 %v1026, 125
    %v1282 = vpop.permute.xlu0 %1281
    %1283 = vrot.lane.b32.xlu0 %v1027, 125
    %v1284 = vpop.permute.xlu0 %1283
    %1285 = vrot.lane.b32.xlu0 %v1028, 125
    %v1286 = vpop.permute.xlu0 %1285
    %1287 = vrot.lane.b32.xlu0 %v1029, 125
    %v1288 = vpop.permute.xlu0 %1287
    %v1294 = vsel %vm582, %v1280, 0
    %1296 = vmatprep.subr.mxu0 0.0
    %1297 = vmatpush1.msra.mxu0 %v1282
    %1298 = vmatprep.subr.mxu0 0.0
    %1299 = vmatpush1.msra.mxu0 %v1284
    %1300 = vmatprep.subr.mxu0 0.0
    %1301 = vmatpush1.msra.mxu0 %v1286
    %1302 = vmatprep.subr.mxu0 0.0
    %1303 = vmatpush1.msra.mxu0 %v1288
    %1304 = vmatprep.subr.mxu0 0.0
    %1305 = vmatpush1.msra.mxu0 0.0
    %1306 = vmatprep.subr.mxu0 0.0
    %1307 = vmatpush1.msra.mxu0 0.0
    %1308 = vmatprep.subr.mxu0 0.0
    %1309 = vmatpush1.msra.mxu0 0.0
    %1310 = vmatprep.subr.mxu0 0.0
    %1311 = vmatpush1.msra.mxu0 0.0
    %1312 = vmatprep.subr.mxu0 0.0
    %1313 = vmatpush1.msra.mxu0 0.0
    %1314 = vmatprep.subr.mxu0 0.0
    %1315 = vmatpush1.msra.mxu0 0.0
    %1316 = vmatprep.subr.mxu0 0.0
    %1317 = vmatpush1.msra.mxu0 0.0
    %1318 = vmatprep.subr.mxu0 0.0
    %1319 = vmatpush1.msra.mxu0 0.0
    %1320 = vmatprep.subr.mxu0 0.0
    %1321 = vmatpush1.msra.mxu0 0.0
    %1322 = vmatprep.subr.mxu0 0.0
    %1323 = vmatpush1.msra.mxu0 0.0
    %1324 = vmatprep.subr.mxu0 0.0
    %1325 = vmatpush1.msra.mxu0 0.0
    %1326 = vmatprep.subr.mxu0 0.0
    %1327 = vmatpush1.msra.mxu0 0.0
    %1328 = vmatprep.subr.mxu0 0.0
    %1329 = vmatpush1.msra.mxu0 0.0
    %1330 = vmatprep.subr.mxu0 0.0
    %1331 = vmatpush1.msra.mxu0 0.0
    %1332 = vmatprep.subr.mxu0 0.0
    %1333 = vmatpush1.msra.mxu0 0.0
    %1334 = vmatprep.subr.mxu0 0.0
    %1335 = vmatpush1.msra.mxu0 0.0
    %1336 = vmatprep.subr.mxu0 0.0
    %1337 = vmatpush1.msra.mxu0 0.0
    %1338 = vmatprep.subr.mxu0 0.0
    %1339 = vmatpush1.msra.mxu0 0.0
    %1340 = vmatprep.subr.mxu0 0.0
    %1341 = vmatpush1.msra.mxu0 0.0
    %1342 = vmatprep.subr.mxu0 0.0
    %1343 = vmatpush1.msra.mxu0 0.0
    %1344 = vmatprep.subr.mxu0 0.0
    %1345 = vmatpush1.msra.mxu0 0.0
    %1346 = vmatprep.subr.mxu0 0.0
    %1347 = vmatpush1.msra.mxu0 0.0
    %1348 = vmatprep.subr.mxu0 0.0
    %1349 = vmatpush1.msra.mxu0 0.0
    %1350 = vmatprep.subr.mxu0 0.0
    %1351 = vmatpush1.msra.mxu0 0.0
    %1352 = vmatprep.subr.mxu0 0.0
    %1353 = vmatpush1.msra.mxu0 0.0
    %1354 = vmatprep.subr.mxu0 0.0
    %1355 = vmatpush1.msra.mxu0 0.0
    %1356 = vmatprep.subr.mxu0 0.0
    %1357 = vmatpush1.msra.mxu0 0.0
    %1358 = vmatprep.subr.mxu0 0.0
    %1359 = vmatpush1.msra.mxu0 0.0
    %1360 = vmatprep.mubr.f32.mxu0 0.0
    %1361 = vmatmul.mubr.f32.gmra.mrb[0].mxu0 %v1294
    %v1362 = vpop.f32.mrb[0].mxu0
    %v1363 = vadd.f32 0.0, %v1362
    %v1364 = vpop.f32.mrb[0].mxu0
    %1365 = vdwg.mxu0
    %v1366 = vadd.f32 %v1279, %v1363
    %v1367 = vld [vmem:[%s905] sm:$0x1]
    %1368 = vrot.lane.b32.xlu0 %v1026, 124
    %v1369 = vpop.permute.xlu0 %1368
    %1370 = vrot.lane.b32.xlu0 %v1027, 124
    %v1371 = vpop.permute.xlu0 %1370
    %1372 = vrot.lane.b32.xlu0 %v1028, 124
    %v1373 = vpop.permute.xlu0 %1372
    %1374 = vrot.lane.b32.xlu0 %v1029, 124
    %v1375 = vpop.permute.xlu0 %1374
    %v1381 = vsel %vm582, %v1367, 0
    %1383 = vmatprep.subr.mxu0 0.0
    %1384 = vmatpush1.msra.mxu0 %v1369
    %1385 = vmatprep.subr.mxu0 0.0
    %1386 = vmatpush1.msra.mxu0 %v1371
    %1387 = vmatprep.subr.mxu0 0.0
    %1388 = vmatpush1.msra.mxu0 %v1373
    %1389 = vmatprep.subr.mxu0 0.0
    %1390 = vmatpush1.msra.mxu0 %v1375
    %1391 = vmatprep.subr.mxu0 0.0
    %1392 = vmatpush1.msra.mxu0 0.0
    %1393 = vmatprep.subr.mxu0 0.0
    %1394 = vmatpush1.msra.mxu0 0.0
    %1395 = vmatprep.subr.mxu0 0.0
    %1396 = vmatpush1.msra.mxu0 0.0
    %1397 = vmatprep.subr.mxu0 0.0
    %1398 = vmatpush1.msra.mxu0 0.0
    %1399 = vmatprep.subr.mxu0 0.0
    %1400 = vmatpush1.msra.mxu0 0.0
    %1401 = vmatprep.subr.mxu0 0.0
    %1402 = vmatpush1.msra.mxu0 0.0
    %1403 = vmatprep.subr.mxu0 0.0
    %1404 = vmatpush1.msra.mxu0 0.0
    %1405 = vmatprep.subr.mxu0 0.0
    %1406 = vmatpush1.msra.mxu0 0.0
    %1407 = vmatprep.subr.mxu0 0.0
    %1408 = vmatpush1.msra.mxu0 0.0
    %1409 = vmatprep.subr.mxu0 0.0
    %1410 = vmatpush1.msra.mxu0 0.0
    %1411 = vmatprep.subr.mxu0 0.0
    %1412 = vmatpush1.msra.mxu0 0.0
    %1413 = vmatprep.subr.mxu0 0.0
    %1414 = vmatpush1.msra.mxu0 0.0
    %1415 = vmatprep.subr.mxu0 0.0
    %1416 = vmatpush1.msra.mxu0 0.0
    %1417 = vmatprep.subr.mxu0 0.0
    %1418 = vmatpush1.msra.mxu0 0.0
    %1419 = vmatprep.subr.mxu0 0.0
    %1420 = vmatpush1.msra.mxu0 0.0
    %1421 = vmatprep.subr.mxu0 0.0
    %1422 = vmatpush1.msra.mxu0 0.0
    %1423 = vmatprep.subr.mxu0 0.0
    %1424 = vmatpush1.msra.mxu0 0.0
    %1425 = vmatprep.subr.mxu0 0.0
    %1426 = vmatpush1.msra.mxu0 0.0
    %1427 = vmatprep.subr.mxu0 0.0
    %1428 = vmatpush1.msra.mxu0 0.0
    %1429 = vmatprep.subr.mxu0 0.0
    %1430 = vmatpush1.msra.mxu0 0.0
    %1431 = vmatprep.subr.mxu0 0.0
    %1432 = vmatpush1.msra.mxu0 0.0
    %1433 = vmatprep.subr.mxu0 0.0
    %1434 = vmatpush1.msra.mxu0 0.0
    %1435 = vmatprep.subr.mxu0 0.0
    %1436 = vmatpush1.msra.mxu0 0.0
    %1437 = vmatprep.subr.mxu0 0.0
    %1438 = vmatpush1.msra.mxu0 0.0
    %1439 = vmatprep.subr.mxu0 0.0
    %1440 = vmatpush1.msra.mxu0 0.0
    %1441 = vmatprep.subr.mxu0 0.0
    %1442 = vmatpush1.msra.mxu0 0.0
    %1443 = vmatprep.subr.mxu0 0.0
    %1444 = vmatpush1.msra.mxu0 0.0
    %1445 = vmatprep.subr.mxu0 0.0
    %1446 = vmatpush1.msra.mxu0 0.0
    %1447 = vmatprep.mubr.f32.mxu0 0.0
    %1448 = vmatmul.mubr.f32.gmra.mrb[0].mxu0 %v1381
    %v1449 = vpop.f32.mrb[0].mxu0
    %v1450 = vadd.f32 0.0, %v1449
    %v1451 = vpop.f32.mrb[0].mxu0
    %1452 = vdwg.mxu0
    %v1453 = vadd.f32 %v1366, %v1450
    %vm1454 = vcmask 516096
    %v1455 = vsel %vm1454, %v992, 0.0
    %1456 = vadd.xlane.f32.xlu0 %v1455
    %v1457 = vpop.xlane.xlu0 %1456
    %v1458 = vmul.f32 %v992, %v992
    %v1459 = vsel %vm1454, %v1458, 0.0
    %1460 = vadd.xlane.f32.xlu0 %v1459
    %v1461 = vpop.xlane.xlu0 %1460
    %v1462 = vsel %vm1454, %v1453, 0.0
    %1463 = vadd.xlane.f32.xlu0 %v1462
    %v1464 = vpop.xlane.xlu0 %1463
    %v1465 = vadd.f32 %v1457, %v1464
    %v1466 = vmul.f32 %v1453, %v1453
    %v1467 = vsel %vm1454, %v1466, 0.0
    %1468 = vadd.xlane.f32.xlu0 %v1467
    %v1469 = vpop.xlane.xlu0 %1468
    %v1470 = vadd.f32 %v1461, %v1469
    %v1471 = vmul.f32 %v1465, 0.0078125
    %v1472 = vmul.f32 %v1470, 0.0078125
    %v1473 = vmul.f32 %v1471, %v1471
    %v1474 = vsub.f32 %v1472, %v1473
    %v1475 = vld [vmem:[%s4] sm:$0x1]
    %v1476 = vadd.f32 %v1474, 1e-05
    %v1477 = vrsqrt.pop %v1476
    %v1478 = vmul.f32 %v1475, %v1477
    %v1479 = vmul.f32 %v1471, %v1478
    %v1482 = vunpack.c.l.s4 1966171168
    %v1483 = vunpack.c.0.s8 %v1482
    %v1484 = vlaneseq
    %v1485 = vshrl.u32 %v1484, 7
    %v1486 = vsub.s32 %v1483, %v1485
    %v1487 = vrot.slane %v1479, %v1486
    %v1489 = vunpack.c.l.s4 1966171168
    %v1490 = vunpack.c.0.s8 %v1489
    %v1491 = vlaneseq
    %v1492 = vshrl.u32 %v1491, 7
    %v1493 = vsub.s32 %v1490, %v1492
    %v1494 = vrot.slane %v1487, %v1493
    %1495 = vrot.lane.b32.xlu0 %v1494, 1
    %v1496 = vpop.permute.xlu0 %1495
    %v1498 = vsub.f32 %v1475, %v1496
    %1500 = vset.pattern.permute.xlu0 0
    %1501 = vperm.xlu0 %1500, %v1478
    %v1502 = vpop.permute.xlu0 %1501
    %v1504 = vlaneseq
    %v1505 = vshrl.u32 %v1504, 7
    %v1506 = vsub.s32 0, %v1505
    %v1507 = vrot.slane %v1502, %v1506
    %v1508 = vmul.f32 %v992, %v1507
    %1510 = vset.pattern.permute.xlu0 1
    %1511 = vperm.xlu0 %1510, %v1498
    %v1512 = vpop.permute.xlu0 %1511
    %v1514 = vlaneseq
    %v1515 = vshrl.u32 %v1514, 7
    %v1516 = vsub.s32 0, %v1515
    %v1517 = vrot.slane %v1512, %v1516
    %v1518 = vadd.f32 %v1508, %v1517
    %v1519 = vmax.f32 %v1518, 0.0
    %1520 = vst.msk [vmem:[#allocation3] sm:$0x1] %vm1454, %v1519
    %v1521 = vmul.f32 %v1453, %v1507
    %v1522 = vadd.f32 %v1521, %v1517
    %v1523 = vmax.f32 %v1522, 0.0
    %s1524 = scalar_lea.vmem [#allocation3], 1
    %1525 = vst.msk [vmem:[%s1524] sm:$0x1] %vm1454, %v1523
    // Predicated region
    $region22: #{tpu_custom_call.1} parent=1 // pred_check
      _
    $region23: #{tpu_custom_call.1} parent=1 // pred_check_branch
      %1527 = sbr.rel (0) target = $region25
    $region24: #{tpu_custom_call.1} parent=1 // pred_region
      %s1529 = ssub.s32 32, 32
      %1530 = vsyncadd [#allocation4], %s1529
      %s1531 = sshll.u32 [#allocation3], 4
      %s1532 = int_to_ptr.vmem [resolvable:$true] %s1531
      %1537 = dma.vmem_to_hbm [thread:$0]  %s1532, 32, %s5, [#allocation4], 16, 16, 1
    $region25: #{tpu_custom_call.1} parent=1 // pred_fallthru
      _
    // Predicated region
    $region26: #{tpu_custom_call.1} parent=1 // pred_check
      _
    $region27: #{tpu_custom_call.1} parent=1 // pred_check_branch
      %1539 = sbr.rel (0) target = $region29
    $region28: #{tpu_custom_call.1} parent=1 // pred_region
      %1540 = dma.done [#allocation4], 32
    $region29: #{tpu_custom_call.1} parent=1 // pred_fallthru
      _
    %1541 = vsyncpa [#allocation4], 1

</llo_original>
